<compile_context>
chip_gen: v7x
topology: tpu7x:2x2x1
jax: 0.10.0
libtpu: 0.0.40
codegen_flags: <defaults>
</compile_context>

<pallas_src>
import functools

import jax
import jax.numpy as jnp
from jax.experimental import pallas as pl
from jax.experimental.pallas import tpu as pltpu

TB = 8  # batch rows per grid step (>= 8 fills vreg sublanes / MXU rows)


def _round_up(x, m):
    return (x + m - 1) // m * m


def _sigmoid(x):
    # sigmoid(x) == 0.5 * (1 + tanh(x / 2)); tanh runs on the EUP slot.
    return 0.5 * (jnp.tanh(0.5 * x) + 1.0)


def attn_decoder_lstm_kernel(
    emb_ref, h_ref, c_ref, enc_ref,                      # per-tile activations
    w_e_ref, w_h_ref, w_c_ref, b_attn_ref,               # fused attn / combine / lstm weights
    w_comb_a_ref, b_comb_ref,
    w_ih_ref, b_lstm_ref,
    w_out_ref, b_out_ref,
    logp_ref, hc_ref, attnw_ref):
    f32 = jnp.float32
    bf16 = jnp.bfloat16

    H = h_ref.shape[-1]
    Lp = b_attn_ref.shape[-1]                            # lane-padded MAX_LENGTH
    Hp = w_ih_ref.shape[-1] // 4                         # 128-lane-aligned gate width

    emb = emb_ref[...]                                   # (TB, E)  bf16
    h = h_ref[...]                                       # (TB, H)  f32
    c = c_ref[...]                                       # (TB, H)  f32
    h_b = h.astype(bf16)
    c_b = c.astype(bf16)

    # Fused same-LHS MXU dots (RHS packed along N, every segment 128-aligned):
    #   r_e = emb @ [w_attn_e | w_comb_e]       -> (TB, Lp + 128)
    #   r_h = h   @ [w_attn_h | w_hh(gates)]    -> (TB, Lp + 4*Hp)
    r_e = jnp.dot(emb, w_e_ref[...], preferred_element_type=f32)
    r_h = jnp.dot(h_b, w_h_ref[...], preferred_element_type=f32)
    r_c = jnp.dot(c_b, w_c_ref[...], preferred_element_type=f32)   # (TB, Lp)

    # attn_weights = softmax(attn([emb, h, c])); pad lanes carry -1e30 bias.
    attn_logits = r_e[:, :Lp] + r_h[:, :Lp] + r_c + b_attn_ref[...]
    a_max = jnp.max(attn_logits, axis=-1, keepdims=True)
    a_exp = jnp.exp(attn_logits - a_max)
    attn_w = a_exp / jnp.sum(a_exp, axis=-1, keepdims=True)         # (TB, Lp) f32
    attnw_ref[...] = attn_w

    # attn_applied[b] = attn_w[b] @ encoder_outputs[b]; per-row (1,Lp)x(Lp,2H)
    # MXU dots, statically unrolled over the TB rows of the tile.
    rows = []
    for b in range(attn_w.shape[0]):
        rows.append(jnp.dot(attn_w[b:b + 1, :].astype(bf16), enc_ref[b],
                            preferred_element_type=f32))            # (1, 2H)
    attn_applied = jnp.concatenate(rows, axis=0)                     # (TB, 2H)

    # x = relu(attn_combine([emb, attn_applied])); emb part pre-computed in r_e.
    comb = (r_e[:, Lp:Lp + H]
            + jnp.dot(attn_applied.astype(bf16), w_comb_a_ref[...],
                      preferred_element_type=f32)
            + b_comb_ref[...])                                       # (TB, H)
    x = jnp.maximum(comb, 0.0)

    # LSTMCell, PyTorch gate order [i | f | g | o]; h @ W_hh already in r_h.
    gates = (jnp.dot(x.astype(bf16), w_ih_ref[...], preferred_element_type=f32)
             + r_h[:, Lp:] + b_lstm_ref[...])                        # (TB, 4*Hp)
    i_g = _sigmoid(gates[:, 0 * Hp:0 * Hp + H])
    f_g = _sigmoid(gates[:, 1 * Hp:1 * Hp + H])
    g_g = jnp.tanh(gates[:, 2 * Hp:2 * Hp + H])
    o_g = _sigmoid(gates[:, 3 * Hp:3 * Hp + H])
    c_new = f_g * c + i_g * g_g
    h_new = o_g * jnp.tanh(c_new)

    # h/c packed lane-dense: [h | c | 0-pad] -> (TB, >=128) unmasked store.
    parts = [h_new, c_new]
    pad_w = hc_ref.shape[-1] - 2 * H
    if pad_w:
        parts.append(jnp.zeros((h_new.shape[0], pad_w), f32))
    hc_ref[...] = jnp.concatenate(parts, axis=-1)

    # logp = log_softmax(out(h_new)); padded vocab lanes carry -1e30 bias.
    logits = (jnp.dot(h_new.astype(bf16), w_out_ref[...],
                      preferred_element_type=f32)
              + b_out_ref[...])                                      # (TB, Vp)
    l_max = jnp.max(logits, axis=-1, keepdims=True)
    shifted = logits - l_max
    lse = jnp.log(jnp.sum(jnp.exp(shifted), axis=-1, keepdims=True))
    logp_ref[...] = shifted - lse


@functools.partial(jax.jit, static_argnums=(4,))
def attn_decoder_forward(tokens, hidden, encoder_outputs, params, max_length):
    """tokens (B,) int32; hidden = (h0, c0) each (B,H) f32;
    encoder_outputs (il, B, 2H) f32.  Returns (logp (B,V), (h,c), attn (B,L))."""
    h0, c0 = hidden
    B, H = h0.shape
    V, E = params["embedding"].shape
    Lp = params["b_attn"].shape[-1]
    Vp = params["w_out"].shape[-1]
    Hp = params["w_ih"].shape[-1] // 4
    H2 = 2 * H
    il = encoder_outputs.shape[0]

    Bp = _round_up(B, TB)
    pad_b = Bp - B
    HCW = max(128, _round_up(2 * H, 128))                # packed [h|c] lane width

    # One XLA gather for the whole batch (B,E) bf16; pad batch to Bp rows.
    emb = params["embedding"][tokens]
    emb_p = jnp.pad(emb, ((0, pad_b), (0, 0)))
    h0_p = jnp.pad(h0, ((0, pad_b), (0, 0)))
    c0_p = jnp.pad(c0, ((0, pad_b), (0, 0)))

    # Module semantics: zero-pad encoder outputs to MAX_LENGTH (further to the
    # lane-padded Lp; extra rows get exactly zero attention probability).
    # Built batch-major directly in bf16 (no f32 intermediate).
    enc_src = jnp.transpose(encoder_outputs.astype(jnp.bfloat16), (1, 0, 2))
    enc = jnp.zeros((Bp, Lp, H2), jnp.bfloat16).at[:B, :il, :].set(enc_src)

    grid = (Bp // TB,)                                   # >=2 steps when B>=16 (v7x megacore)

    def row2(i):
        return (i, 0)

    def row3(i):
        return (i, 0, 0)

    def const2(i):                                       # resident weight block
        return (0, 0)

    grid_spec = pltpu.PrefetchScalarGridSpec(
        num_scalar_prefetch=0,
        grid=grid,
        in_specs=[
            pl.BlockSpec((TB, E), row2),                 # embedded rows
            pl.BlockSpec((TB, H), row2),                 # h0
            pl.BlockSpec((TB, H), row2),                 # c0
            pl.BlockSpec((TB, Lp, H2), row3),            # encoder outputs
            pl.BlockSpec(params["w_e_pack"].shape, const2),
            pl.BlockSpec(params["w_h_pack"].shape, const2),
            pl.BlockSpec(params["w_attn_c"].shape, const2),
            pl.BlockSpec(params["b_attn"].shape, const2),
            pl.BlockSpec(params["w_comb_a"].shape, const2),
            pl.BlockSpec(params["b_comb"].shape, const2),
            pl.BlockSpec(params["w_ih"].shape, const2),
            pl.BlockSpec(params["b_lstm"].shape, const2),
            pl.BlockSpec(params["w_out"].shape, const2),
            pl.BlockSpec(params["b_out"].shape, const2),
        ],
        out_specs=[
            pl.BlockSpec((TB, Vp), row2),                # logp (lane padded)
            pl.BlockSpec((TB, HCW), row2),               # packed [h | c]
            pl.BlockSpec((TB, Lp), row2),                # attn weights (lane padded)
        ],
    )

    Np_e = params["w_e_pack"].shape[-1]
    Np_h = params["w_h_pack"].shape[-1]
    flops = 2 * Bp * (E * Np_e + H * Np_h + H * Lp + Lp * H2
                      + H2 * H + H * 4 * Hp + H * Vp)
    bytes_accessed = int(
        sum(x.size * x.dtype.itemsize for x in params.values())
        + emb_p.size * 2 + enc.size * 2 + (h0_p.size + c0_p.size) * 4
        + Bp * (Vp + HCW + Lp) * 4)
    cost = pl.CostEstimate(flops=int(flops),
                           transcendentals=int(Bp * (Lp + Vp + 5 * H)),
                           bytes_accessed=bytes_accessed)

    logp_p, hc_p, attn_p = pl.pallas_call(
        attn_decoder_lstm_kernel,
        grid_spec=grid_spec,
        out_shape=(
            jax.ShapeDtypeStruct((Bp, Vp), jnp.float32),
            jax.ShapeDtypeStruct((Bp, HCW), jnp.float32),
            jax.ShapeDtypeStruct((Bp, Lp), jnp.float32),
        ),
        compiler_params=pltpu.CompilerParams(
            dimension_semantics=("parallel",)),
        cost_estimate=cost,
    )(emb_p, h0_p, c0_p, enc,
      params["w_e_pack"], params["w_h_pack"], params["w_attn_c"], params["b_attn"],
      params["w_comb_a"], params["b_comb"],
      params["w_ih"], params["b_lstm"],
      params["w_out"], params["b_out"])

    logp = logp_p[:B, :V]
    h_new = hc_p[:B, :H]
    c_new = hc_p[:B, H:2 * H]
    attn_w = attn_p[:B, :max_length]
    return logp, (h_new, c_new), attn_w


def reference_forward(tokens, hidden, encoder_outputs, params, max_length):
    """Pure-JAX mirror of the kernel math (same packed weights / bf16 MXU casts)."""
    f32, bf16 = jnp.float32, jnp.bfloat16
    h0, c0 = hidden
    B, H = h0.shape
    V = params["embedding"].shape[0]
    Lp = params["b_attn"].shape[-1]
    Hp = params["w_ih"].shape[-1] // 4
    H2 = 2 * H
    il = encoder_outputs.shape[0]

    dot = lambda a, b: jnp.dot(a.astype(bf16), b, preferred_element_type=f32)

    emb = params["embedding"][tokens]                                # (B, E) bf16
    h_b, c_b = h0.astype(bf16), c0.astype(bf16)

    r_e = dot(emb, params["w_e_pack"])
    r_h = dot(h_b, params["w_h_pack"])
    r_c = dot(c_b, params["w_attn_c"])
    attn_logits = r_e[:, :Lp] + r_h[:, :Lp] + r_c + params["b_attn"]
    attn_w = jax.nn.softmax(attn_logits, axis=-1)                    # (B, Lp)

    enc = jnp.zeros((B, Lp, H2), bf16).at[:, :il, :].set(
        jnp.transpose(encoder_outputs.astype(bf16), (1, 0, 2)))
    attn_applied = jnp.einsum("bl,bld->bd", attn_w.astype(bf16), enc,
                              preferred_element_type=f32)            # (B, 2H)

    comb = (r_e[:, Lp:Lp + H] + dot(attn_applied, params["w_comb_a"])
            + params["b_comb"])
    x = jnp.maximum(comb, 0.0)

    gates = dot(x, params["w_ih"]) + r_h[:, Lp:] + params["b_lstm"]
    i_g = jax.nn.sigmoid(gates[:, 0 * Hp:0 * Hp + H])
    f_g = jax.nn.sigmoid(gates[:, 1 * Hp:1 * Hp + H])
    g_g = jnp.tanh(gates[:, 2 * Hp:2 * Hp + H])
    o_g = jax.nn.sigmoid(gates[:, 3 * Hp:3 * Hp + H])
    c_new = f_g * c0 + i_g * g_g
    h_new = o_g * jnp.tanh(c_new)

    logits = dot(h_new, params["w_out"]) + params["b_out"]
    logp = jax.nn.log_softmax(logits, axis=-1)[:, :V]
    return logp, (h_new, c_new), attn_w[:, :max_length]


def init_params(key, emb_size, hidden_size, output_size, max_length):
    E, H, V, L = emb_size, hidden_size, output_size, max_length
    Hp = _round_up(max(H, 1), 128)
    Lp = _round_up(max(L, 1), 128)
    Vp = _round_up(max(V, 1), 128)
    Cp = _round_up(max(H, 1), 128)          # attn_combine segment inside w_e_pack
    f32, bf16 = jnp.float32, jnp.bfloat16
    NEG = -1e30
    ks = jax.random.split(key, 11)

    def u(kk, fan_in, shape):
        bound = float(fan_in) ** -0.5
        return jax.random.uniform(kk, shape, f32, -bound, bound)

    # PyTorch-layout parameters
    embedding = jax.random.normal(ks[0], (V, E), f32)
    attn_w = u(ks[1], E + 2 * H, (L, E + 2 * H))
    attn_b = u(ks[2], E + 2 * H, (L,))
    comb_w = u(ks[3], E + 2 * H, (H, E + 2 * H))
    comb_b = u(ks[4], E + 2 * H, (H,))
    w_ih = u(ks[5], H, (4 * H, H))
    w_hh = u(ks[6], H, (4 * H, H))
    b_ih = u(ks[7], H, (4 * H,))
    b_hh = u(ks[8], H, (4 * H,))
    out_w = u(ks[9], H, (V, H))
    out_b = u(ks[10], H, (V,))

    def pad_cols(x, width, fill=0.0):
        out = jnp.full(x.shape[:-1] + (width,), fill, f32)
        return out.at[..., :x.shape[-1]].set(x)

    def gate_pad(wt):  # (rows, 4H) -> (rows, 4*Hp), each gate 128-lane aligned
        out = jnp.zeros((wt.shape[0], 4 * Hp), f32)
        for g in range(4):
            out = out.at[:, g * Hp:g * Hp + H].set(wt[:, g * H:(g + 1) * H])
        return out

    attn_w_t = attn_w.T                                  # (E+2H, L)
    comb_w_t = comb_w.T                                  # (E+2H, H)

    w_attn_e = pad_cols(attn_w_t[:E], Lp)                # (E, Lp)
    w_attn_h = pad_cols(attn_w_t[E:E + H], Lp)           # (H, Lp)
    w_attn_c = pad_cols(attn_w_t[E + H:], Lp)            # (H, Lp)
    w_comb_e = pad_cols(comb_w_t[:E], Cp)                # (E, Cp)
    w_comb_a = comb_w_t[E:]                              # (2H, H)
    w_ih_p = gate_pad(w_ih.T)                            # (H, 4Hp)
    w_hh_p = gate_pad(w_hh.T)                            # (H, 4Hp)

    return {
        "embedding": embedding.astype(bf16),
        # same-LHS weights fused along N (128-lane-aligned segments):
        "w_e_pack": jnp.concatenate([w_attn_e, w_comb_e], axis=1).astype(bf16),
        "w_h_pack": jnp.concatenate([w_attn_h, w_hh_p], axis=1).astype(bf16),
        "w_attn_c": w_attn_c.astype(bf16),
        "b_attn": pad_cols(attn_b[None, :], Lp, NEG),    # (1, Lp) f32
        "w_comb_a": w_comb_a.astype(bf16),               # (2H, H)
        "b_comb": comb_b[None, :],                       # (1, H)  f32
        "w_ih": w_ih_p.astype(bf16),                     # (H, 4Hp)
        "b_lstm": gate_pad((b_ih + b_hh)[None, :]),      # (1, 4Hp) f32, folded bias
        "w_out": pad_cols(out_w.T, Vp).astype(bf16),     # (H, Vp)
        "b_out": pad_cols(out_b[None, :], Vp, NEG),      # (1, Vp) f32
    }


if __name__ == "__main__":
    emb_size = 32
    hidden_size = 32
    output_size = 64
    max_length = 20
    batch = 2
    input_length = 8

    key = jax.random.PRNGKey(0)
    kp, kt, kh, kc, ke = jax.random.split(key, 5)

    params = init_params(kp, emb_size, hidden_size, output_size, max_length)
    tokens = jax.random.randint(kt, (batch,), 0, output_size, dtype=jnp.int32)
    h0 = jax.random.normal(kh, (batch, hidden_size), jnp.float32)
    c0 = jax.random.normal(kc, (batch, hidden_size), jnp.float32)
    encoder_outputs = jax.random.normal(
        ke, (input_length, batch, 2 * hidden_size), jnp.float32)

    logp, (h_new, c_new), attn_w = attn_decoder_forward(
        tokens, (h0, c0), encoder_outputs, params, max_length)
    jax.block_until_ready((logp, h_new, c_new, attn_w))

    ref_logp, (ref_h, ref_c), ref_attn = reference_forward(
        tokens, (h0, c0), encoder_outputs, params, max_length)

    assert logp.shape == (batch, output_size)
    assert h_new.shape == (batch, hidden_size)
    assert c_new.shape == (batch, hidden_size)
    assert attn_w.shape == (batch, max_length)
    assert jnp.allclose(logp, ref_logp, atol=1e-4, rtol=1e-4)
    assert jnp.allclose(h_new, ref_h, atol=1e-4, rtol=1e-4)
    assert jnp.allclose(c_new, ref_c, atol=1e-4, rtol=1e-4)
    assert jnp.allclose(attn_w, ref_attn, atol=1e-4, rtol=1e-4)

    print("KERNEL_OK")
</pallas_src>

<mosaic_0001>
module attributes {stable_mosaic.version = 11 : i64} {
  func.func @attn_decoder_lstm_kernel(%arg0: i32, %arg1: memref<8x32xbf16, #tpu.memory_space<vmem>>, %arg2: memref<8x32xf32, #tpu.memory_space<vmem>>, %arg3: memref<8x32xf32, #tpu.memory_space<vmem>>, %arg4: memref<8x128x64xbf16, #tpu.memory_space<vmem>>, %arg5: memref<32x256xbf16, #tpu.memory_space<vmem>>, %arg6: memref<32x640xbf16, #tpu.memory_space<vmem>>, %arg7: memref<32x128xbf16, #tpu.memory_space<vmem>>, %arg8: memref<1x128xf32, #tpu.memory_space<vmem>>, %arg9: memref<64x32xbf16, #tpu.memory_space<vmem>>, %arg10: memref<1x32xf32, #tpu.memory_space<vmem>>, %arg11: memref<32x512xbf16, #tpu.memory_space<vmem>>, %arg12: memref<1x512xf32, #tpu.memory_space<vmem>>, %arg13: memref<32x128xbf16, #tpu.memory_space<vmem>>, %arg14: memref<1x128xf32, #tpu.memory_space<vmem>>, %arg15: memref<8x128xf32, #tpu.memory_space<vmem>>, %arg16: memref<8x128xf32, #tpu.memory_space<vmem>>, %arg17: memref<8x128xf32, #tpu.memory_space<vmem>>) attributes {dimension_semantics = [#tpu.dimension_semantics<parallel>], iteration_bounds = array<i64: 1>, scalar_prefetch = 0 : i64, scratch_operands = 0 : i64, tpu.core_type = #tpu.core_type<tc>, window_params = [{transform_indices = @transform_0, window_bounds = array<i64: 8, 32>}, {transform_indices = @transform_1, window_bounds = array<i64: 8, 32>}, {transform_indices = @transform_2, window_bounds = array<i64: 8, 32>}, {transform_indices = @transform_3, window_bounds = array<i64: 8, 128, 64>}, {pipeline_mode = #tpu.pipeline_mode<synchronous>, transform_indices = @transform_4, window_bounds = array<i64: 32, 256>}, {pipeline_mode = #tpu.pipeline_mode<synchronous>, transform_indices = @transform_5, window_bounds = array<i64: 32, 640>}, {pipeline_mode = #tpu.pipeline_mode<synchronous>, transform_indices = @transform_6, window_bounds = array<i64: 32, 128>}, {pipeline_mode = #tpu.pipeline_mode<synchronous>, transform_indices = @transform_7, window_bounds = array<i64: 1, 128>}, {pipeline_mode = #tpu.pipeline_mode<synchronous>, transform_indices = @transform_8, window_bounds = array<i64: 64, 32>}, {pipeline_mode = #tpu.pipeline_mode<synchronous>, transform_indices = @transform_9, window_bounds = array<i64: 1, 32>}, {pipeline_mode = #tpu.pipeline_mode<synchronous>, transform_indices = @transform_10, window_bounds = array<i64: 32, 512>}, {pipeline_mode = #tpu.pipeline_mode<synchronous>, transform_indices = @transform_11, window_bounds = array<i64: 1, 512>}, {pipeline_mode = #tpu.pipeline_mode<synchronous>, transform_indices = @transform_12, window_bounds = array<i64: 32, 128>}, {pipeline_mode = #tpu.pipeline_mode<synchronous>, transform_indices = @transform_13, window_bounds = array<i64: 1, 128>}, {transform_indices = @transform_14, window_bounds = array<i64: 8, 128>}, {transform_indices = @transform_15, window_bounds = array<i64: 8, 128>}, {transform_indices = @transform_16, window_bounds = array<i64: 8, 128>}]} {
    %c0 = arith.constant 0 : index
    %c0_0 = arith.constant 0 : index
    %0 = vector.load %arg1[%c0, %c0_0] : memref<8x32xbf16, #tpu.memory_space<vmem>>, vector<8x32xbf16>
    %c0_1 = arith.constant 0 : index
    %c0_2 = arith.constant 0 : index
    %1 = vector.load %arg2[%c0_1, %c0_2] : memref<8x32xf32, #tpu.memory_space<vmem>>, vector<8x32xf32>
    %c0_3 = arith.constant 0 : index
    %c0_4 = arith.constant 0 : index
    %2 = vector.load %arg3[%c0_3, %c0_4] : memref<8x32xf32, #tpu.memory_space<vmem>>, vector<8x32xf32>
    %3 = arith.truncf %1 : vector<8x32xf32> to vector<8x32xbf16>
    %4 = arith.truncf %2 : vector<8x32xf32> to vector<8x32xbf16>
    %c0_5 = arith.constant 0 : index
    %c0_6 = arith.constant 0 : index
    %5 = vector.load %arg5[%c0_5, %c0_6] : memref<32x256xbf16, #tpu.memory_space<vmem>>, vector<32x256xbf16>
    %cst = arith.constant dense<0.000000e+00> : vector<8x256xf32>
    %6 = tpu.matmul %0, %5, %cst {dimension_numbers = #tpu.dot_dimension_numbers<[1], [0], [0], [1], [0, 0, 1, 1], [], []>} : vector<8x32xbf16>, vector<32x256xbf16>, vector<8x256xf32> -> vector<8x256xf32>
    %c0_7 = arith.constant 0 : index
    %c0_8 = arith.constant 0 : index
    %7 = vector.load %arg6[%c0_7, %c0_8] : memref<32x640xbf16, #tpu.memory_space<vmem>>, vector<32x640xbf16>
    %cst_9 = arith.constant dense<0.000000e+00> : vector<8x640xf32>
    %8 = tpu.matmul %3, %7, %cst_9 {dimension_numbers = #tpu.dot_dimension_numbers<[1], [0], [0], [1], [0, 0, 1, 1], [], []>} : vector<8x32xbf16>, vector<32x640xbf16>, vector<8x640xf32> -> vector<8x640xf32>
    %c0_10 = arith.constant 0 : index
    %c0_11 = arith.constant 0 : index
    %9 = vector.load %arg7[%c0_10, %c0_11] : memref<32x128xbf16, #tpu.memory_space<vmem>>, vector<32x128xbf16>
    %cst_12 = arith.constant dense<0.000000e+00> : vector<8x128xf32>
    %10 = tpu.matmul %4, %9, %cst_12 {dimension_numbers = #tpu.dot_dimension_numbers<[1], [0], [0], [1], [0, 0, 1, 1], [], []>} : vector<8x32xbf16>, vector<32x128xbf16>, vector<8x128xf32> -> vector<8x128xf32>
    %11 = vector.extract_strided_slice %6 {offsets = [0, 0], sizes = [8, 128], strides = [1, 1]} : vector<8x256xf32> to vector<8x128xf32>
    %12 = vector.extract_strided_slice %8 {offsets = [0, 0], sizes = [8, 128], strides = [1, 1]} : vector<8x640xf32> to vector<8x128xf32>
    %13 = arith.addf %11, %12 : vector<8x128xf32>
    %14 = arith.addf %13, %10 : vector<8x128xf32>
    %c0_13 = arith.constant 0 : index
    %c0_14 = arith.constant 0 : index
    %15 = vector.load %arg8[%c0_13, %c0_14] : memref<1x128xf32, #tpu.memory_space<vmem>>, vector<1x128xf32>
    %16 = vector.broadcast %15 : vector<1x128xf32> to vector<8x128xf32>
    %17 = arith.addf %14, %16 : vector<8x128xf32>
    %cst_15 = arith.constant dense<0xFF800000> : vector<8xf32>
    %18 = vector.multi_reduction <maximumf>, %17, %cst_15 [1] : vector<8x128xf32> to vector<8xf32>
    %19 = vector.shape_cast %18 : vector<8xf32> to vector<8x1xf32>
    %20 = vector.broadcast %19 : vector<8x1xf32> to vector<8x128xf32>
    %21 = arith.subf %17, %20 : vector<8x128xf32>
    %22 = math.exp %21 : vector<8x128xf32>
    %cst_16 = arith.constant dense<0.000000e+00> : vector<8xf32>
    %23 = vector.multi_reduction <add>, %22, %cst_16 [1] : vector<8x128xf32> to vector<8xf32>
    %24 = vector.shape_cast %23 : vector<8xf32> to vector<8x1xf32>
    %25 = vector.broadcast %24 : vector<8x1xf32> to vector<8x128xf32>
    %26 = arith.divf %22, %25 : vector<8x128xf32>
    %c0_17 = arith.constant 0 : index
    %c0_18 = arith.constant 0 : index
    %27 = vector.load %arg17[%c0_17, %c0_18] : memref<8x128xf32, #tpu.memory_space<vmem>>, vector<8x128xf32>
    tpu.vector_store %arg17[%c0_17, %c0_18], %26 {strides = array<i32>} : memref<8x128xf32, #tpu.memory_space<vmem>>, vector<8x128xf32>,
    %28 = vector.extract_strided_slice %26 {offsets = [0, 0], sizes = [1, 128], strides = [1, 1]} : vector<8x128xf32> to vector<1x128xf32>
    %29 = arith.truncf %28 : vector<1x128xf32> to vector<1x128xbf16>
    %c0_19 = arith.constant 0 : index
    %c0_20 = arith.constant 0 : index
    %c0_21 = arith.constant 0 : index
    %30 = vector.load %arg4[%c0_19, %c0_20, %c0_21] : memref<8x128x64xbf16, #tpu.memory_space<vmem>>, vector<1x128x64xbf16>
    %31 = vector.shape_cast %30 : vector<1x128x64xbf16> to vector<128x64xbf16>
    %cst_22 = arith.constant dense<0.000000e+00> : vector<1x64xf32>
    %32 = tpu.matmul %29, %31, %cst_22 {dimension_numbers = #tpu.dot_dimension_numbers<[1], [0], [0], [1], [0, 0, 1, 1], [], []>} : vector<1x128xbf16>, vector<128x64xbf16>, vector<1x64xf32> -> vector<1x64xf32>
    %33 = vector.extract_strided_slice %26 {offsets = [1, 0], sizes = [1, 128], strides = [1, 1]} : vector<8x128xf32> to vector<1x128xf32>
    %34 = arith.truncf %33 : vector<1x128xf32> to vector<1x128xbf16>
    %c1 = arith.constant 1 : index
    %c0_23 = arith.constant 0 : index
    %c0_24 = arith.constant 0 : index
    %35 = vector.load %arg4[%c1, %c0_23, %c0_24] : memref<8x128x64xbf16, #tpu.memory_space<vmem>>, vector<1x128x64xbf16>
    %36 = vector.shape_cast %35 : vector<1x128x64xbf16> to vector<128x64xbf16>
    %cst_25 = arith.constant dense<0.000000e+00> : vector<1x64xf32>
    %37 = tpu.matmul %34, %36, %cst_25 {dimension_numbers = #tpu.dot_dimension_numbers<[1], [0], [0], [1], [0, 0, 1, 1], [], []>} : vector<1x128xbf16>, vector<128x64xbf16>, vector<1x64xf32> -> vector<1x64xf32>
    %38 = vector.extract_strided_slice %26 {offsets = [2, 0], sizes = [1, 128], strides = [1, 1]} : vector<8x128xf32> to vector<1x128xf32>
    %39 = arith.truncf %38 : vector<1x128xf32> to vector<1x128xbf16>
    %c2 = arith.constant 2 : index
    %c0_26 = arith.constant 0 : index
    %c0_27 = arith.constant 0 : index
    %40 = vector.load %arg4[%c2, %c0_26, %c0_27] : memref<8x128x64xbf16, #tpu.memory_space<vmem>>, vector<1x128x64xbf16>
    %41 = vector.shape_cast %40 : vector<1x128x64xbf16> to vector<128x64xbf16>
    %cst_28 = arith.constant dense<0.000000e+00> : vector<1x64xf32>
    %42 = tpu.matmul %39, %41, %cst_28 {dimension_numbers = #tpu.dot_dimension_numbers<[1], [0], [0], [1], [0, 0, 1, 1], [], []>} : vector<1x128xbf16>, vector<128x64xbf16>, vector<1x64xf32> -> vector<1x64xf32>
    %43 = vector.extract_strided_slice %26 {offsets = [3, 0], sizes = [1, 128], strides = [1, 1]} : vector<8x128xf32> to vector<1x128xf32>
    %44 = arith.truncf %43 : vector<1x128xf32> to vector<1x128xbf16>
    %c3 = arith.constant 3 : index
    %c0_29 = arith.constant 0 : index
    %c0_30 = arith.constant 0 : index
    %45 = vector.load %arg4[%c3, %c0_29, %c0_30] : memref<8x128x64xbf16, #tpu.memory_space<vmem>>, vector<1x128x64xbf16>
    %46 = vector.shape_cast %45 : vector<1x128x64xbf16> to vector<128x64xbf16>
    %cst_31 = arith.constant dense<0.000000e+00> : vector<1x64xf32>
    %47 = tpu.matmul %44, %46, %cst_31 {dimension_numbers = #tpu.dot_dimension_numbers<[1], [0], [0], [1], [0, 0, 1, 1], [], []>} : vector<1x128xbf16>, vector<128x64xbf16>, vector<1x64xf32> -> vector<1x64xf32>
    %48 = vector.extract_strided_slice %26 {offsets = [4, 0], sizes = [1, 128], strides = [1, 1]} : vector<8x128xf32> to vector<1x128xf32>
    %49 = arith.truncf %48 : vector<1x128xf32> to vector<1x128xbf16>
    %c4 = arith.constant 4 : index
    %c0_32 = arith.constant 0 : index
    %c0_33 = arith.constant 0 : index
    %50 = vector.load %arg4[%c4, %c0_32, %c0_33] : memref<8x128x64xbf16, #tpu.memory_space<vmem>>, vector<1x128x64xbf16>
    %51 = vector.shape_cast %50 : vector<1x128x64xbf16> to vector<128x64xbf16>
    %cst_34 = arith.constant dense<0.000000e+00> : vector<1x64xf32>
    %52 = tpu.matmul %49, %51, %cst_34 {dimension_numbers = #tpu.dot_dimension_numbers<[1], [0], [0], [1], [0, 0, 1, 1], [], []>} : vector<1x128xbf16>, vector<128x64xbf16>, vector<1x64xf32> -> vector<1x64xf32>
    %53 = vector.extract_strided_slice %26 {offsets = [5, 0], sizes = [1, 128], strides = [1, 1]} : vector<8x128xf32> to vector<1x128xf32>
    %54 = arith.truncf %53 : vector<1x128xf32> to vector<1x128xbf16>
    %c5 = arith.constant 5 : index
    %c0_35 = arith.constant 0 : index
    %c0_36 = arith.constant 0 : index
    %55 = vector.load %arg4[%c5, %c0_35, %c0_36] : memref<8x128x64xbf16, #tpu.memory_space<vmem>>, vector<1x128x64xbf16>
    %56 = vector.shape_cast %55 : vector<1x128x64xbf16> to vector<128x64xbf16>
    %cst_37 = arith.constant dense<0.000000e+00> : vector<1x64xf32>
    %57 = tpu.matmul %54, %56, %cst_37 {dimension_numbers = #tpu.dot_dimension_numbers<[1], [0], [0], [1], [0, 0, 1, 1], [], []>} : vector<1x128xbf16>, vector<128x64xbf16>, vector<1x64xf32> -> vector<1x64xf32>
    %58 = vector.extract_strided_slice %26 {offsets = [6, 0], sizes = [1, 128], strides = [1, 1]} : vector<8x128xf32> to vector<1x128xf32>
    %59 = arith.truncf %58 : vector<1x128xf32> to vector<1x128xbf16>
    %c6 = arith.constant 6 : index
    %c0_38 = arith.constant 0 : index
    %c0_39 = arith.constant 0 : index
    %60 = vector.load %arg4[%c6, %c0_38, %c0_39] : memref<8x128x64xbf16, #tpu.memory_space<vmem>>, vector<1x128x64xbf16>
    %61 = vector.shape_cast %60 : vector<1x128x64xbf16> to vector<128x64xbf16>
    %cst_40 = arith.constant dense<0.000000e+00> : vector<1x64xf32>
    %62 = tpu.matmul %59, %61, %cst_40 {dimension_numbers = #tpu.dot_dimension_numbers<[1], [0], [0], [1], [0, 0, 1, 1], [], []>} : vector<1x128xbf16>, vector<128x64xbf16>, vector<1x64xf32> -> vector<1x64xf32>
    %63 = vector.extract_strided_slice %26 {offsets = [7, 0], sizes = [1, 128], strides = [1, 1]} : vector<8x128xf32> to vector<1x128xf32>
    %64 = arith.truncf %63 : vector<1x128xf32> to vector<1x128xbf16>
    %c7 = arith.constant 7 : index
    %c0_41 = arith.constant 0 : index
    %c0_42 = arith.constant 0 : index
    %65 = vector.load %arg4[%c7, %c0_41, %c0_42] : memref<8x128x64xbf16, #tpu.memory_space<vmem>>, vector<1x128x64xbf16>
    %66 = vector.shape_cast %65 : vector<1x128x64xbf16> to vector<128x64xbf16>
    %cst_43 = arith.constant dense<0.000000e+00> : vector<1x64xf32>
    %67 = tpu.matmul %64, %66, %cst_43 {dimension_numbers = #tpu.dot_dimension_numbers<[1], [0], [0], [1], [0, 0, 1, 1], [], []>} : vector<1x128xbf16>, vector<128x64xbf16>, vector<1x64xf32> -> vector<1x64xf32>
    %68 = tpu.concatenate %32, %37, %42, %47, %52, %57, %62, %67 in 0 : vector<1x64xf32>, vector<1x64xf32>, vector<1x64xf32>, vector<1x64xf32>, vector<1x64xf32>, vector<1x64xf32>, vector<1x64xf32>, vector<1x64xf32> -> vector<8x64xf32>
    %69 = vector.extract_strided_slice %6 {offsets = [0, 128], sizes = [8, 32], strides = [1, 1]} : vector<8x256xf32> to vector<8x32xf32>
    %70 = arith.truncf %68 : vector<8x64xf32> to vector<8x64xbf16>
    %c0_44 = arith.constant 0 : index
    %c0_45 = arith.constant 0 : index
    %71 = vector.load %arg9[%c0_44, %c0_45] : memref<64x32xbf16, #tpu.memory_space<vmem>>, vector<64x32xbf16>
    %cst_46 = arith.constant dense<0.000000e+00> : vector<8x32xf32>
    %72 = tpu.matmul %70, %71, %cst_46 {dimension_numbers = #tpu.dot_dimension_numbers<[1], [0], [0], [1], [0, 0, 1, 1], [], []>} : vector<8x64xbf16>, vector<64x32xbf16>, vector<8x32xf32> -> vector<8x32xf32>
    %73 = arith.addf %69, %72 : vector<8x32xf32>
    %c0_47 = arith.constant 0 : index
    %c0_48 = arith.constant 0 : index
    %74 = vector.load %arg10[%c0_47, %c0_48] : memref<1x32xf32, #tpu.memory_space<vmem>>, vector<1x32xf32>
    %75 = vector.broadcast %74 : vector<1x32xf32> to vector<8x32xf32>
    %76 = arith.addf %73, %75 : vector<8x32xf32>
    %cst_49 = arith.constant 0.000000e+00 : f32
    %77 = vector.broadcast %cst_49 : f32 to vector<8x32xf32>
    %78 = arith.maximumf %76, %77 : vector<8x32xf32>
    %79 = arith.truncf %78 : vector<8x32xf32> to vector<8x32xbf16>
    %c0_50 = arith.constant 0 : index
    %c0_51 = arith.constant 0 : index
    %80 = vector.load %arg11[%c0_50, %c0_51] : memref<32x512xbf16, #tpu.memory_space<vmem>>, vector<32x512xbf16>
    %cst_52 = arith.constant dense<0.000000e+00> : vector<8x512xf32>
    %81 = tpu.matmul %79, %80, %cst_52 {dimension_numbers = #tpu.dot_dimension_numbers<[1], [0], [0], [1], [0, 0, 1, 1], [], []>} : vector<8x32xbf16>, vector<32x512xbf16>, vector<8x512xf32> -> vector<8x512xf32>
    %82 = vector.extract_strided_slice %8 {offsets = [0, 128], sizes = [8, 512], strides = [1, 1]} : vector<8x640xf32> to vector<8x512xf32>
    %83 = arith.addf %81, %82 : vector<8x512xf32>
    %c0_53 = arith.constant 0 : index
    %c0_54 = arith.constant 0 : index
    %84 = vector.load %arg12[%c0_53, %c0_54] : memref<1x512xf32, #tpu.memory_space<vmem>>, vector<1x512xf32>
    %85 = vector.broadcast %84 : vector<1x512xf32> to vector<8x512xf32>
    %86 = arith.addf %83, %85 : vector<8x512xf32>
    %87 = vector.extract_strided_slice %86 {offsets = [0, 0], sizes = [8, 32], strides = [1, 1]} : vector<8x512xf32> to vector<8x32xf32>
    %cst_55 = arith.constant 5.000000e-01 : f32
    %88 = vector.broadcast %cst_55 : f32 to vector<8x32xf32>
    %89 = arith.mulf %88, %87 : vector<8x32xf32>
    %90 = math.tanh %89 : vector<8x32xf32>
    %cst_56 = arith.constant 1.000000e+00 : f32
    %91 = vector.broadcast %cst_56 : f32 to vector<8x32xf32>
    %92 = arith.addf %90, %91 : vector<8x32xf32>
    %cst_57 = arith.constant 5.000000e-01 : f32
    %93 = vector.broadcast %cst_57 : f32 to vector<8x32xf32>
    %94 = arith.mulf %93, %92 : vector<8x32xf32>
    %95 = vector.extract_strided_slice %86 {offsets = [0, 128], sizes = [8, 32], strides = [1, 1]} : vector<8x512xf32> to vector<8x32xf32>
    %cst_58 = arith.constant 5.000000e-01 : f32
    %96 = vector.broadcast %cst_58 : f32 to vector<8x32xf32>
    %97 = arith.mulf %96, %95 : vector<8x32xf32>
    %98 = math.tanh %97 : vector<8x32xf32>
    %cst_59 = arith.constant 1.000000e+00 : f32
    %99 = vector.broadcast %cst_59 : f32 to vector<8x32xf32>
    %100 = arith.addf %98, %99 : vector<8x32xf32>
    %cst_60 = arith.constant 5.000000e-01 : f32
    %101 = vector.broadcast %cst_60 : f32 to vector<8x32xf32>
    %102 = arith.mulf %101, %100 : vector<8x32xf32>
    %103 = vector.extract_strided_slice %86 {offsets = [0, 256], sizes = [8, 32], strides = [1, 1]} : vector<8x512xf32> to vector<8x32xf32>
    %104 = math.tanh %103 : vector<8x32xf32>
    %105 = vector.extract_strided_slice %86 {offsets = [0, 384], sizes = [8, 32], strides = [1, 1]} : vector<8x512xf32> to vector<8x32xf32>
    %cst_61 = arith.constant 5.000000e-01 : f32
    %106 = vector.broadcast %cst_61 : f32 to vector<8x32xf32>
    %107 = arith.mulf %106, %105 : vector<8x32xf32>
    %108 = math.tanh %107 : vector<8x32xf32>
    %cst_62 = arith.constant 1.000000e+00 : f32
    %109 = vector.broadcast %cst_62 : f32 to vector<8x32xf32>
    %110 = arith.addf %108, %109 : vector<8x32xf32>
    %cst_63 = arith.constant 5.000000e-01 : f32
    %111 = vector.broadcast %cst_63 : f32 to vector<8x32xf32>
    %112 = arith.mulf %111, %110 : vector<8x32xf32>
    %113 = arith.mulf %102, %2 : vector<8x32xf32>
    %114 = arith.mulf %94, %104 : vector<8x32xf32>
    %115 = arith.addf %113, %114 : vector<8x32xf32>
    %116 = math.tanh %115 : vector<8x32xf32>
    %117 = arith.mulf %112, %116 : vector<8x32xf32>
    %cst_64 = arith.constant 0.000000e+00 : f32
    %118 = vector.broadcast %cst_64 : f32 to vector<8x64xf32>
    %119 = tpu.concatenate %117, %115, %118 in 1 : vector<8x32xf32>, vector<8x32xf32>, vector<8x64xf32> -> vector<8x128xf32>
    %c0_65 = arith.constant 0 : index
    %c0_66 = arith.constant 0 : index
    %120 = vector.load %arg16[%c0_65, %c0_66] : memref<8x128xf32, #tpu.memory_space<vmem>>, vector<8x128xf32>
    tpu.vector_store %arg16[%c0_65, %c0_66], %119 {strides = array<i32>} : memref<8x128xf32, #tpu.memory_space<vmem>>, vector<8x128xf32>,
    %121 = arith.truncf %117 : vector<8x32xf32> to vector<8x32xbf16>
    %c0_67 = arith.constant 0 : index
    %c0_68 = arith.constant 0 : index
    %122 = vector.load %arg13[%c0_67, %c0_68] : memref<32x128xbf16, #tpu.memory_space<vmem>>, vector<32x128xbf16>
    %cst_69 = arith.constant dense<0.000000e+00> : vector<8x128xf32>
    %123 = tpu.matmul %121, %122, %cst_69 {dimension_numbers = #tpu.dot_dimension_numbers<[1], [0], [0], [1], [0, 0, 1, 1], [], []>} : vector<8x32xbf16>, vector<32x128xbf16>, vector<8x128xf32> -> vector<8x128xf32>
    %c0_70 = arith.constant 0 : index
    %c0_71 = arith.constant 0 : index
    %124 = vector.load %arg14[%c0_70, %c0_71] : memref<1x128xf32, #tpu.memory_space<vmem>>, vector<1x128xf32>
    %125 = vector.broadcast %124 : vector<1x128xf32> to vector<8x128xf32>
    %126 = arith.addf %123, %125 : vector<8x128xf32>
    %cst_72 = arith.constant dense<0xFF800000> : vector<8xf32>
    %127 = vector.multi_reduction <maximumf>, %126, %cst_72 [1] : vector<8x128xf32> to vector<8xf32>
    %128 = vector.shape_cast %127 : vector<8xf32> to vector<8x1xf32>
    %129 = vector.broadcast %128 : vector<8x1xf32> to vector<8x128xf32>
    %130 = arith.subf %126, %129 : vector<8x128xf32>
    %131 = math.exp %130 : vector<8x128xf32>
    %cst_73 = arith.constant dense<0.000000e+00> : vector<8xf32>
    %132 = vector.multi_reduction <add>, %131, %cst_73 [1] : vector<8x128xf32> to vector<8xf32>
    %133 = vector.shape_cast %132 : vector<8xf32> to vector<8x1xf32>
    %134 = math.log %133 : vector<8x1xf32>
    %135 = vector.broadcast %134 : vector<8x1xf32> to vector<8x128xf32>
    %136 = arith.subf %130, %135 : vector<8x128xf32>
    %c0_74 = arith.constant 0 : index
    %c0_75 = arith.constant 0 : index
    %137 = vector.load %arg15[%c0_74, %c0_75] : memref<8x128xf32, #tpu.memory_space<vmem>>, vector<8x128xf32>
    tpu.vector_store %arg15[%c0_74, %c0_75], %136 {strides = array<i32>} : memref<8x128xf32, #tpu.memory_space<vmem>>, vector<8x128xf32>,
    return
  }
  func.func @transform_0(%arg0: i32) -> (i32, i32) {
    %c0_i32 = arith.constant 0 : i32
    %c0_i32_0 = arith.constant 0 : i32
    return %arg0, %c0_i32 : i32, i32
  }
  func.func @transform_1(%arg0: i32) -> (i32, i32) {
    %c0_i32 = arith.constant 0 : i32
    %c0_i32_0 = arith.constant 0 : i32
    return %arg0, %c0_i32 : i32, i32
  }
  func.func @transform_2(%arg0: i32) -> (i32, i32) {
    %c0_i32 = arith.constant 0 : i32
    %c0_i32_0 = arith.constant 0 : i32
    return %arg0, %c0_i32 : i32, i32
  }
  func.func @transform_3(%arg0: i32) -> (i32, i32, i32) {
    %c0_i32 = arith.constant 0 : i32
    %c0_i32_0 = arith.constant 0 : i32
    %c0_i32_1 = arith.constant 0 : i32
    return %arg0, %c0_i32, %c0_i32_0 : i32, i32, i32
  }
  func.func @transform_4(%arg0: i32) -> (i32, i32) {
    %c0_i32 = arith.constant 0 : i32
    %c0_i32_0 = arith.constant 0 : i32
    %c0_i32_1 = arith.constant 0 : i32
    return %c0_i32, %c0_i32_0 : i32, i32
  }
  func.func @transform_5(%arg0: i32) -> (i32, i32) {
    %c0_i32 = arith.constant 0 : i32
    %c0_i32_0 = arith.constant 0 : i32
    %c0_i32_1 = arith.constant 0 : i32
    return %c0_i32, %c0_i32_0 : i32, i32
  }
  func.func @transform_6(%arg0: i32) -> (i32, i32) {
    %c0_i32 = arith.constant 0 : i32
    %c0_i32_0 = arith.constant 0 : i32
    %c0_i32_1 = arith.constant 0 : i32
    return %c0_i32, %c0_i32_0 : i32, i32
  }
  func.func @transform_7(%arg0: i32) -> (i32, i32) {
    %c0_i32 = arith.constant 0 : i32
    %c0_i32_0 = arith.constant 0 : i32
    %c0_i32_1 = arith.constant 0 : i32
    return %c0_i32, %c0_i32_0 : i32, i32
  }
  func.func @transform_8(%arg0: i32) -> (i32, i32) {
    %c0_i32 = arith.constant 0 : i32
    %c0_i32_0 = arith.constant 0 : i32
    %c0_i32_1 = arith.constant 0 : i32
    return %c0_i32, %c0_i32_0 : i32, i32
  }
  func.func @transform_9(%arg0: i32) -> (i32, i32) {
    %c0_i32 = arith.constant 0 : i32
    %c0_i32_0 = arith.constant 0 : i32
    %c0_i32_1 = arith.constant 0 : i32
    return %c0_i32, %c0_i32_0 : i32, i32
  }
  func.func @transform_10(%arg0: i32) -> (i32, i32) {
    %c0_i32 = arith.constant 0 : i32
    %c0_i32_0 = arith.constant 0 : i32
    %c0_i32_1 = arith.constant 0 : i32
    return %c0_i32, %c0_i32_0 : i32, i32
  }
  func.func @transform_11(%arg0: i32) -> (i32, i32) {
    %c0_i32 = arith.constant 0 : i32
    %c0_i32_0 = arith.constant 0 : i32
    %c0_i32_1 = arith.constant 0 : i32
    return %c0_i32, %c0_i32_0 : i32, i32
  }
  func.func @transform_12(%arg0: i32) -> (i32, i32) {
    %c0_i32 = arith.constant 0 : i32
    %c0_i32_0 = arith.constant 0 : i32
    %c0_i32_1 = arith.constant 0 : i32
    return %c0_i32, %c0_i32_0 : i32, i32
  }
  func.func @transform_13(%arg0: i32) -> (i32, i32) {
    %c0_i32 = arith.constant 0 : i32
    %c0_i32_0 = arith.constant 0 : i32
    %c0_i32_1 = arith.constant 0 : i32
    return %c0_i32, %c0_i32_0 : i32, i32
  }
  func.func @transform_14(%arg0: i32) -> (i32, i32) {
    %c0_i32 = arith.constant 0 : i32
    %c0_i32_0 = arith.constant 0 : i32
    return %arg0, %c0_i32 : i32, i32
  }
  func.func @transform_15(%arg0: i32) -> (i32, i32) {
    %c0_i32 = arith.constant 0 : i32
    %c0_i32_0 = arith.constant 0 : i32
    return %arg0, %c0_i32 : i32, i32
  }
  func.func @transform_16(%arg0: i32) -> (i32, i32) {
    %c0_i32 = arith.constant 0 : i32
    %c0_i32_0 = arith.constant 0 : i32
    return %arg0, %c0_i32 : i32, i32
  }
}

</mosaic_0001>

<llo_original>
// kernel: attn_decoder_forward.1
$region0: #{attn_decoder_forward.1}
  #allocation0 [shape = 'u32[]', space=smem, size = 0x4, offset = 0x4, fixed_abs, tag = 'smem constant byte address 0x4 - core index']
  #allocation1 [shape = 'u32[144,128]{1,0:T(1,128)}', space=vmem, size = 0x12000, scoped, tag = 'internal scratch']
  %s0 = inlined_call_operand.vmem [shape: bf16[8,32], index: 0, kind: input, shape index: {}]
  %s1 = inlined_call_operand.vmem [shape: f32[8,32], index: 1, kind: input, shape index: {}]
  %s2 = inlined_call_operand.vmem [shape: f32[8,32], index: 2, kind: input, shape index: {}]
  %s3 = inlined_call_operand.vmem [shape: bf16[8,128,64], index: 3, kind: input, shape index: {}]
  %s4 = inlined_call_operand.vmem [shape: bf16[32,256], index: 4, kind: input, shape index: {}]
  %s5 = inlined_call_operand.vmem [shape: bf16[32,640], index: 5, kind: input, shape index: {}]
  %s6 = inlined_call_operand.vmem [shape: bf16[32,128], index: 6, kind: input, shape index: {}]
  %s7 = inlined_call_operand.vmem [shape: f32[1,128], index: 7, kind: input, shape index: {}]
  %s8 = inlined_call_operand.vmem [shape: bf16[64,32], index: 8, kind: input, shape index: {}]
  %s9 = inlined_call_operand.vmem [shape: f32[1,32], index: 9, kind: input, shape index: {}]
  %s10 = inlined_call_operand.vmem [shape: bf16[32,512], index: 10, kind: input, shape index: {}]
  %s11 = inlined_call_operand.vmem [shape: f32[1,512], index: 11, kind: input, shape index: {}]
  %s12 = inlined_call_operand.vmem [shape: bf16[32,128], index: 12, kind: input, shape index: {}]
  %s13 = inlined_call_operand.vmem [shape: f32[1,128], index: 13, kind: input, shape index: {}]
  %s14 = inlined_call_operand.vmem [shape: f32[8,128], index: 14, kind: output, shape index: {0}]
  %s15 = inlined_call_operand.vmem [shape: f32[8,128], index: 15, kind: output, shape index: {1}]
  %s16 = inlined_call_operand.vmem [shape: f32[8,128], index: 16, kind: output, shape index: {2}]
  %17 = xla_tuple %s14, %s15, %s16
  %s18 = sld [smem:[#allocation0]]
  $region82: #{attn_decoder_forward.1} parent=0
    _
  %s20 = ssub.s32 1, %s18
  %s21 = scalar_select 0, %s20, %s18
  // Predicated region
  $region2: #{attn_decoder_forward.1} parent=0 // pred_check
    _
  $region3: #{attn_decoder_forward.1} parent=0 // pred_check_branch
    %23 = sbr.rel (0) target = $region5
  $region4: #{attn_decoder_forward.1} parent=0 // pred_region
    _
  $region5: #{attn_decoder_forward.1} parent=0 // pred_fallthru
    _
  // Predicated region
  $region6: #{attn_decoder_forward.1} parent=0 // pred_check
    _
  $region7: #{attn_decoder_forward.1} parent=0 // pred_check_branch
    %25 = sbr.rel (0) target = $region9
  $region8: #{attn_decoder_forward.1} parent=0 // pred_region
    _
  $region9: #{attn_decoder_forward.1} parent=0 // pred_fallthru
    _
  // Predicated region
  $region10: #{attn_decoder_forward.1} parent=0 // pred_check
    _
  $region11: #{attn_decoder_forward.1} parent=0 // pred_check_branch
    %27 = sbr.rel (0) target = $region13
  $region12: #{attn_decoder_forward.1} parent=0 // pred_region
    _
  $region13: #{attn_decoder_forward.1} parent=0 // pred_fallthru
    _
  // Predicated region
  $region14: #{attn_decoder_forward.1} parent=0 // pred_check
    _
  $region15: #{attn_decoder_forward.1} parent=0 // pred_check_branch
    %29 = sbr.rel (0) target = $region17
  $region16: #{attn_decoder_forward.1} parent=0 // pred_region
    _
  $region17: #{attn_decoder_forward.1} parent=0 // pred_fallthru
    _
  // Predicated region
  $region18: #{attn_decoder_forward.1} parent=0 // pred_check
    _
  $region19: #{attn_decoder_forward.1} parent=0 // pred_check_branch
    %31 = sbr.rel (0) target = $region21
  $region20: #{attn_decoder_forward.1} parent=0 // pred_region
    _
  $region21: #{attn_decoder_forward.1} parent=0 // pred_fallthru
    _
  // Predicated region
  $region22: #{attn_decoder_forward.1} parent=0 // pred_check
    _
  $region23: #{attn_decoder_forward.1} parent=0 // pred_check_branch
    %33 = sbr.rel (0) target = $region25
  $region24: #{attn_decoder_forward.1} parent=0 // pred_region
    _
  $region25: #{attn_decoder_forward.1} parent=0 // pred_fallthru
    _
  // Predicated region
  $region26: #{attn_decoder_forward.1} parent=0 // pred_check
    _
  $region27: #{attn_decoder_forward.1} parent=0 // pred_check_branch
    %35 = sbr.rel (0) target = $region29
  $region28: #{attn_decoder_forward.1} parent=0 // pred_region
    _
  $region29: #{attn_decoder_forward.1} parent=0 // pred_fallthru
    _
  // Predicated region
  $region30: #{attn_decoder_forward.1} parent=0 // pred_check
    _
  $region31: #{attn_decoder_forward.1} parent=0 // pred_check_branch
    %37 = sbr.rel (0) target = $region33
  $region32: #{attn_decoder_forward.1} parent=0 // pred_region
    _
  $region33: #{attn_decoder_forward.1} parent=0 // pred_fallthru
    _
  // Predicated region
  $region34: #{attn_decoder_forward.1} parent=0 // pred_check
    _
  $region35: #{attn_decoder_forward.1} parent=0 // pred_check_branch
    %39 = sbr.rel (0) target = $region37
  $region36: #{attn_decoder_forward.1} parent=0 // pred_region
    _
  $region37: #{attn_decoder_forward.1} parent=0 // pred_fallthru
    _
  // Predicated region
  $region38: #{attn_decoder_forward.1} parent=0 // pred_check
    _
  $region39: #{attn_decoder_forward.1} parent=0 // pred_check_branch
    %41 = sbr.rel (0) target = $region41
  $region40: #{attn_decoder_forward.1} parent=0 // pred_region
    _
  $region41: #{attn_decoder_forward.1} parent=0 // pred_fallthru
    _
  // Predicated region
  $region42: #{attn_decoder_forward.1} parent=0 // pred_check
    _
  $region43: #{attn_decoder_forward.1} parent=0 // pred_check_branch
    %43 = sbr.rel (0) target = $region45
  $region44: #{attn_decoder_forward.1} parent=0 // pred_region
    _
  $region45: #{attn_decoder_forward.1} parent=0 // pred_fallthru
    _
  // Predicated region
  $region46: #{attn_decoder_forward.1} parent=0 // pred_check
    _
  $region47: #{attn_decoder_forward.1} parent=0 // pred_check_branch
    %45 = sbr.rel (0) target = $region49
  $region48: #{attn_decoder_forward.1} parent=0 // pred_region
    _
  $region49: #{attn_decoder_forward.1} parent=0 // pred_fallthru
    _
  // Predicated region
  $region50: #{attn_decoder_forward.1} parent=0 // pred_check
    _
  $region51: #{attn_decoder_forward.1} parent=0 // pred_check_branch
    %47 = sbr.rel (0) target = $region53
  $region52: #{attn_decoder_forward.1} parent=0 // pred_region
    _
  $region53: #{attn_decoder_forward.1} parent=0 // pred_fallthru
    _
  // Predicated region
  $region54: #{attn_decoder_forward.1} parent=0 // pred_check
    _
  $region55: #{attn_decoder_forward.1} parent=0 // pred_check_branch
    %49 = sbr.rel (0) target = $region57
  $region56: #{attn_decoder_forward.1} parent=0 // pred_region
    _
  $region57: #{attn_decoder_forward.1} parent=0 // pred_fallthru
    _
  %v51 = vld [vmem:[%s0] sm:$0xf]
  %v52 = vld [vmem:[%s1] sm:$0xff]
  %v53 = vld [vmem:[%s2] sm:$0xff]
  %v54 = vpack.c.bf16 %v52, %v52
  %v55 = vpack.c.bf16 %v53, %v53
  %v56 = vld [vmem:[%s4] sm:$0xff]
  %v57 = vld [vmem:[%s4 + $0x8] sm:$0xff]
  %v58 = vld [vmem:[%s4 + $0x10] sm:$0xff]
  %v59 = vld [vmem:[%s4 + $0x18] sm:$0xff]
  %v64 = vunpack.c.l.b16 %v56
  %v65 = vunpack.c.h.b16 %v56
  %v66 = vunpack.c.l.b16 %v57
  %v67 = vunpack.c.h.b16 %v57
  %v68 = vunpack.c.l.b16 %v58
  %v69 = vunpack.c.h.b16 %v58
  %v70 = vunpack.c.l.b16 %v59
  %v71 = vunpack.c.h.b16 %v59
  %v72 = vpack.c.b16 %v66, %v64
  %v73 = vpack.c.b16 %v67, %v65
  %v74 = vpack.c.b16 %v70, %v68
  %v75 = vpack.c.b16 %v71, %v69
  %vm80 = vcmask 261120
  %v82 = vsel %vm80, %v51, 0
  %84 = vmatprep.subr.bf16.mxu0 %v73
  %85 = vmatpush1.bf16.msra.mxu0 %v72
  %86 = vmatprep.subr.bf16.mxu0 %v75
  %87 = vmatpush1.bf16.msra.mxu0 %v74
  %88 = vmatprep.subr.bf16.mxu0 0
  %89 = vmatpush1.bf16.msra.mxu0 0
  %90 = vmatprep.subr.bf16.mxu0 0
  %91 = vmatpush1.bf16.msra.mxu0 0
  %92 = vmatprep.subr.bf16.mxu0 0
  %93 = vmatpush1.bf16.msra.mxu0 0
  %94 = vmatprep.subr.bf16.mxu0 0
  %95 = vmatpush1.bf16.msra.mxu0 0
  %96 = vmatprep.subr.bf16.mxu0 0
  %97 = vmatpush1.bf16.msra.mxu0 0
  %98 = vmatprep.subr.bf16.mxu0 0
  %99 = vmatpush1.bf16.msra.mxu0 0
  %100 = vmatprep.subr.bf16.mxu0 0
  %101 = vmatpush1.bf16.msra.mxu0 0
  %102 = vmatprep.subr.bf16.mxu0 0
  %103 = vmatpush1.bf16.msra.mxu0 0
  %104 = vmatprep.subr.bf16.mxu0 0
  %105 = vmatpush1.bf16.msra.mxu0 0
  %106 = vmatprep.subr.bf16.mxu0 0
  %107 = vmatpush1.bf16.msra.mxu0 0
  %108 = vmatprep.subr.bf16.mxu0 0
  %109 = vmatpush1.bf16.msra.mxu0 0
  %110 = vmatprep.subr.bf16.mxu0 0
  %111 = vmatpush1.bf16.msra.mxu0 0
  %112 = vmatprep.subr.bf16.mxu0 0
  %113 = vmatpush1.bf16.msra.mxu0 0
  %114 = vmatprep.subr.bf16.mxu0 0
  %115 = vmatpush1.bf16.msra.mxu0 0
  %116 = vmatprep.mubr.bf16.mxu0 0
  %117 = vmatmul.mubr.bf16.gmra.mrb[0].mxu0 %v82
  %v118 = vpop.f32.mrb[0].mxu0
  %v119 = vadd.f32 0.0, %v118
  %v120 = vpop.f32.mrb[0].mxu0
  %v121 = vadd.f32 0.0, %v120
  %v122 = vpop.f32.mrb[0].mxu0
  %v123 = vpop.f32.mrb[0].mxu0
  %124 = vdwg.mxu0
  %v125 = vld [vmem:[%s5] sm:$0xff]
  %v126 = vld [vmem:[%s5 + $0x8] sm:$0xff]
  %v127 = vld [vmem:[%s5 + $0x10] sm:$0xf]
  %v128 = vld [vmem:[%s5 + $0x14] sm:$0xff]
  %v129 = vld [vmem:[%s5 + $0x1c] sm:$0xff]
  %v130 = vld [vmem:[%s5 + $0x24] sm:$0xf]
  %v131 = vld [vmem:[%s5 + $0x28] sm:$0xff]
  %v132 = vld [vmem:[%s5 + $0x30] sm:$0xff]
  %v133 = vld [vmem:[%s5 + $0x38] sm:$0xf]
  %v134 = vld [vmem:[%s5 + $0x3c] sm:$0xff]
  %v135 = vld [vmem:[%s5 + $0x44] sm:$0xff]
  %v136 = vld [vmem:[%s5 + $0x4c] sm:$0xf]
  %v149 = vunpack.c.l.b16 %v125
  %v150 = vunpack.c.h.b16 %v125
  %v151 = vunpack.c.l.b16 %v126
  %v152 = vunpack.c.h.b16 %v126
  %v153 = vunpack.c.l.b16 %v127
  %v154 = vunpack.c.l.b16 %v128
  %v155 = vunpack.c.h.b16 %v128
  %v156 = vunpack.c.l.b16 %v129
  %v157 = vunpack.c.h.b16 %v129
  %v158 = vunpack.c.l.b16 %v130
  %v159 = vunpack.c.l.b16 %v131
  %v160 = vunpack.c.h.b16 %v131
  %v161 = vunpack.c.l.b16 %v132
  %v162 = vunpack.c.h.b16 %v132
  %v163 = vunpack.c.l.b16 %v133
  %v164 = vunpack.c.l.b16 %v134
  %v165 = vunpack.c.h.b16 %v134
  %v166 = vunpack.c.l.b16 %v135
  %v167 = vunpack.c.h.b16 %v135
  %v168 = vunpack.c.l.b16 %v136
  %v169 = vpack.c.b16 %v154, %v149
  %v170 = vpack.c.b16 %v155, %v150
  %v171 = vpack.c.b16 %v156, %v151
  %v172 = vpack.c.b16 %v157, %v152
  %v173 = vpack.c.b16 %v158, %v153
  %v174 = vpack.c.b16 %v164, %v159
  %v175 = vpack.c.b16 %v165, %v160
  %v176 = vpack.c.b16 %v166, %v161
  %v177 = vpack.c.b16 %v167, %v162
  %v178 = vpack.c.b16 %v168, %v163
  %v190 = vsel %vm80, %v54, 0
  %192 = vmatprep.subr.bf16.mxu0 %v170
  %193 = vmatpush1.bf16.msra.mxu0 %v169
  %194 = vmatprep.subr.bf16.mxu0 %v175
  %195 = vmatpush1.bf16.msra.mxu0 %v174
  %196 = vmatprep.subr.bf16.mxu0 0
  %197 = vmatpush1.bf16.msra.mxu0 0
  %198 = vmatprep.subr.bf16.mxu0 0
  %199 = vmatpush1.bf16.msra.mxu0 0
  %200 = vmatprep.subr.bf16.mxu0 0
  %201 = vmatpush1.bf16.msra.mxu0 0
  %202 = vmatprep.subr.bf16.mxu0 0
  %203 = vmatpush1.bf16.msra.mxu0 0
  %204 = vmatprep.subr.bf16.mxu0 0
  %205 = vmatpush1.bf16.msra.mxu0 0
  %206 = vmatprep.subr.bf16.mxu0 0
  %207 = vmatpush1.bf16.msra.mxu0 0
  %208 = vmatprep.subr.bf16.mxu0 0
  %209 = vmatpush1.bf16.msra.mxu0 0
  %210 = vmatprep.subr.bf16.mxu0 0
  %211 = vmatpush1.bf16.msra.mxu0 0
  %212 = vmatprep.subr.bf16.mxu0 0
  %213 = vmatpush1.bf16.msra.mxu0 0
  %214 = vmatprep.subr.bf16.mxu0 0
  %215 = vmatpush1.bf16.msra.mxu0 0
  %216 = vmatprep.subr.bf16.mxu0 0
  %217 = vmatpush1.bf16.msra.mxu0 0
  %218 = vmatprep.subr.bf16.mxu0 0
  %219 = vmatpush1.bf16.msra.mxu0 0
  %220 = vmatprep.subr.bf16.mxu0 0
  %221 = vmatpush1.bf16.msra.mxu0 0
  %222 = vmatprep.subr.bf16.mxu0 0
  %223 = vmatpush1.bf16.msra.mxu0 0
  %224 = vmatprep.mubr.bf16.mxu0 0
  %225 = vmatmul.mubr.bf16.gmra.mrb[0].mxu0 %v190
  %v226 = vpop.f32.mrb[0].mxu0
  %v227 = vadd.f32 0.0, %v226
  %v228 = vpop.f32.mrb[0].mxu0
  %v229 = vadd.f32 0.0, %v228
  %v230 = vpop.f32.mrb[0].mxu0
  %v231 = vpop.f32.mrb[0].mxu0
  %232 = vdwg.mxu0
  %233 = vmatprep.subr.bf16.mxu0 %v172
  %234 = vmatpush1.bf16.msra.mxu0 %v171
  %235 = vmatprep.subr.bf16.mxu0 %v177
  %236 = vmatpush1.bf16.msra.mxu0 %v176
  %237 = vmatprep.subr.bf16.mxu0 0
  %238 = vmatpush1.bf16.msra.mxu0 0
  %239 = vmatprep.subr.bf16.mxu0 0
  %240 = vmatpush1.bf16.msra.mxu0 0
  %241 = vmatprep.subr.bf16.mxu0 0
  %242 = vmatpush1.bf16.msra.mxu0 0
  %243 = vmatprep.subr.bf16.mxu0 0
  %244 = vmatpush1.bf16.msra.mxu0 0
  %245 = vmatprep.subr.bf16.mxu0 0
  %246 = vmatpush1.bf16.msra.mxu0 0
  %247 = vmatprep.subr.bf16.mxu0 0
  %248 = vmatpush1.bf16.msra.mxu0 0
  %249 = vmatprep.subr.bf16.mxu0 0
  %250 = vmatpush1.bf16.msra.mxu0 0
  %251 = vmatprep.subr.bf16.mxu0 0
  %252 = vmatpush1.bf16.msra.mxu0 0
  %253 = vmatprep.subr.bf16.mxu0 0
  %254 = vmatpush1.bf16.msra.mxu0 0
  %255 = vmatprep.subr.bf16.mxu0 0
  %256 = vmatpush1.bf16.msra.mxu0 0
  %257 = vmatprep.subr.bf16.mxu0 0
  %258 = vmatpush1.bf16.msra.mxu0 0
  %259 = vmatprep.subr.bf16.mxu0 0
  %260 = vmatpush1.bf16.msra.mxu0 0
  %261 = vmatprep.subr.bf16.mxu0 0
  %262 = vmatpush1.bf16.msra.mxu0 0
  %263 = vmatprep.subr.bf16.mxu0 0
  %264 = vmatpush1.bf16.msra.mxu0 0
  %265 = vmatprep.mubr.bf16.mxu0 0
  %266 = vmatmul.mubr.bf16.gmra.mrb[0].mxu0 %v190
  %v267 = vpop.f32.mrb[0].mxu0
  %v268 = vadd.f32 0.0, %v267
  %v269 = vpop.f32.mrb[0].mxu0
  %v270 = vadd.f32 0.0, %v269
  %v271 = vpop.f32.mrb[0].mxu0
  %v272 = vpop.f32.mrb[0].mxu0
  %273 = vdwg.mxu0
  %274 = vmatprep.subr.bf16.mxu0 0
  %275 = vmatpush1.bf16.msra.mxu0 %v173
  %276 = vmatprep.subr.bf16.mxu0 0
  %277 = vmatpush1.bf16.msra.mxu0 %v178
  %278 = vmatprep.subr.bf16.mxu0 0
  %279 = vmatpush1.bf16.msra.mxu0 0
  %280 = vmatprep.subr.bf16.mxu0 0
  %281 = vmatpush1.bf16.msra.mxu0 0
  %282 = vmatprep.subr.bf16.mxu0 0
  %283 = vmatpush1.bf16.msra.mxu0 0
  %284 = vmatprep.subr.bf16.mxu0 0
  %285 = vmatpush1.bf16.msra.mxu0 0
  %286 = vmatprep.subr.bf16.mxu0 0
  %287 = vmatpush1.bf16.msra.mxu0 0
  %288 = vmatprep.subr.bf16.mxu0 0
  %289 = vmatpush1.bf16.msra.mxu0 0
  %290 = vmatprep.subr.bf16.mxu0 0
  %291 = vmatpush1.bf16.msra.mxu0 0
  %292 = vmatprep.subr.bf16.mxu0 0
  %293 = vmatpush1.bf16.msra.mxu0 0
  %294 = vmatprep.subr.bf16.mxu0 0
  %295 = vmatpush1.bf16.msra.mxu0 0
  %296 = vmatprep.subr.bf16.mxu0 0
  %297 = vmatpush1.bf16.msra.mxu0 0
  %298 = vmatprep.subr.bf16.mxu0 0
  %299 = vmatpush1.bf16.msra.mxu0 0
  %300 = vmatprep.subr.bf16.mxu0 0
  %301 = vmatpush1.bf16.msra.mxu0 0
  %302 = vmatprep.subr.bf16.mxu0 0
  %303 = vmatpush1.bf16.msra.mxu0 0
  %304 = vmatprep.subr.bf16.mxu0 0
  %305 = vmatpush1.bf16.msra.mxu0 0
  %306 = vmatprep.mubr.bf16.mxu0 0
  %307 = vmatmul.mubr.bf16.gmra.mrb[0].mxu0 %v190
  %v308 = vpop.f32.mrb[0].mxu0
  %v309 = vadd.f32 0.0, %v308
  %v310 = vpop.f32.mrb[0].mxu0
  %v311 = vpop.f32.mrb[0].mxu0
  %v312 = vpop.f32.mrb[0].mxu0
  %313 = vdwg.mxu0
  %v314 = vld [vmem:[%s6] sm:$0xf]
  %v315 = vld [vmem:[%s6 + $0x4] sm:$0xf]
  %v316 = vld [vmem:[%s6 + $0x8] sm:$0xf]
  %v317 = vld [vmem:[%s6 + $0xc] sm:$0xf]
  %v322 = vunpack.c.l.b16 %v314
  %v323 = vunpack.c.l.b16 %v315
  %v324 = vunpack.c.l.b16 %v316
  %v325 = vunpack.c.l.b16 %v317
  %v326 = vpack.c.b16 %v323, %v322
  %v327 = vpack.c.b16 %v325, %v324
  %v331 = vsel %vm80, %v55, 0
  %333 = vmatprep.subr.bf16.mxu0 0
  %334 = vmatpush1.bf16.msra.mxu0 %v326
  %335 = vmatprep.subr.bf16.mxu0 0
  %336 = vmatpush1.bf16.msra.mxu0 %v327
  %337 = vmatprep.subr.bf16.mxu0 0
  %338 = vmatpush1.bf16.msra.mxu0 0
  %339 = vmatprep.subr.bf16.mxu0 0
  %340 = vmatpush1.bf16.msra.mxu0 0
  %341 = vmatprep.subr.bf16.mxu0 0
  %342 = vmatpush1.bf16.msra.mxu0 0
  %343 = vmatprep.subr.bf16.mxu0 0
  %344 = vmatpush1.bf16.msra.mxu0 0
  %345 = vmatprep.subr.bf16.mxu0 0
  %346 = vmatpush1.bf16.msra.mxu0 0
  %347 = vmatprep.subr.bf16.mxu0 0
  %348 = vmatpush1.bf16.msra.mxu0 0
  %349 = vmatprep.subr.bf16.mxu0 0
  %350 = vmatpush1.bf16.msra.mxu0 0
  %351 = vmatprep.subr.bf16.mxu0 0
  %352 = vmatpush1.bf16.msra.mxu0 0
  %353 = vmatprep.subr.bf16.mxu0 0
  %354 = vmatpush1.bf16.msra.mxu0 0
  %355 = vmatprep.subr.bf16.mxu0 0
  %356 = vmatpush1.bf16.msra.mxu0 0
  %357 = vmatprep.subr.bf16.mxu0 0
  %358 = vmatpush1.bf16.msra.mxu0 0
  %359 = vmatprep.subr.bf16.mxu0 0
  %360 = vmatpush1.bf16.msra.mxu0 0
  %361 = vmatprep.subr.bf16.mxu0 0
  %362 = vmatpush1.bf16.msra.mxu0 0
  %363 = vmatprep.subr.bf16.mxu0 0
  %364 = vmatpush1.bf16.msra.mxu0 0
  %365 = vmatprep.mubr.bf16.mxu0 0
  %366 = vmatmul.mubr.bf16.gmra.mrb[0].mxu0 %v331
  %v367 = vpop.f32.mrb[0].mxu0
  %v368 = vadd.f32 0.0, %v367
  %v369 = vpop.f32.mrb[0].mxu0
  %v370 = vpop.f32.mrb[0].mxu0
  %v371 = vpop.f32.mrb[0].mxu0
  %372 = vdwg.mxu0
  %v373 = vadd.f32 %v119, %v227
  %v374 = vadd.f32 %v373, %v368
  %v375 = vld [vmem:[%s7] sm:$0x1]
  %v377 = vlaneseq
  %v378 = vshrl.u32 %v377, 7
  %v379 = vsub.s32 0, %v378
  %v380 = vrot.slane %v375, %v379
  %v382 = vadd.f32 %v374, %v380
  %383 = vmax.xlane.f32.xlu0 %v382
  %v384 = vpop.xlane.xlu0 %383
  %v385 = vsub.f32 %v382, %v384
  %v386 = vmul.f32 %v385, 1.442695
  %v387 = vpow.pop %v386
  %388 = vadd.xlane.f32.xlu0 %v387
  %v389 = vpop.xlane.xlu0 %388
  %v390 = vrcp.pop %v389
  %v391 = vmul.f32 %v387, %v390
  %392 = vst [vmem:[%s16] sm:$0xff] %v391
  %v393 = vpack.c.bf16 %v391, %v391
  %v394 = vld [vmem:[%s3] sm:$0xf]
  %v395 = vld [vmem:[%s3 + $0x4] sm:$0xf]
  %v396 = vld [vmem:[%s3 + $0x8] sm:$0xf]
  %v397 = vld [vmem:[%s3 + $0xc] sm:$0xf]
  %v398 = vld [vmem:[%s3 + $0x10] sm:$0xf]
  %v399 = vld [vmem:[%s3 + $0x14] sm:$0xf]
  %v400 = vld [vmem:[%s3 + $0x18] sm:$0xf]
  %v401 = vld [vmem:[%s3 + $0x1c] sm:$0xf]
  %v402 = vld [vmem:[%s3 + $0x20] sm:$0xf]
  %v403 = vld [vmem:[%s3 + $0x24] sm:$0xf]
  %v404 = vld [vmem:[%s3 + $0x28] sm:$0xf]
  %v405 = vld [vmem:[%s3 + $0x2c] sm:$0xf]
  %v406 = vld [vmem:[%s3 + $0x30] sm:$0xf]
  %v407 = vld [vmem:[%s3 + $0x34] sm:$0xf]
  %v408 = vld [vmem:[%s3 + $0x38] sm:$0xf]
  %v409 = vld [vmem:[%s3 + $0x3c] sm:$0xf]
  %v426 = vunpack.c.l.b16 %v394
  %v427 = vunpack.c.l.b16 %v395
  %v428 = vunpack.c.l.b16 %v396
  %v429 = vunpack.c.l.b16 %v397
  %v430 = vunpack.c.l.b16 %v398
  %v431 = vunpack.c.l.b16 %v399
  %v432 = vunpack.c.l.b16 %v400
  %v433 = vunpack.c.l.b16 %v401
  %v434 = vunpack.c.l.b16 %v402
  %v435 = vunpack.c.l.b16 %v403
  %v436 = vunpack.c.l.b16 %v404
  %v437 = vunpack.c.l.b16 %v405
  %v438 = vunpack.c.l.b16 %v406
  %v439 = vunpack.c.l.b16 %v407
  %v440 = vunpack.c.l.b16 %v408
  %v441 = vunpack.c.l.b16 %v409
  %v442 = vpack.c.b16 %v427, %v426
  %v443 = vpack.c.b16 %v429, %v428
  %v444 = vpack.c.b16 %v431, %v430
  %v445 = vpack.c.b16 %v433, %v432
  %v446 = vpack.c.b16 %v435, %v434
  %v447 = vpack.c.b16 %v437, %v436
  %v448 = vpack.c.b16 %v439, %v438
  %v449 = vpack.c.b16 %v441, %v440
  %458 = vmatprep.subr.bf16.mxu0 0
  %459 = vmatpush1.bf16.msra.mxu0 %v442
  %460 = vmatprep.subr.bf16.mxu0 0
  %461 = vmatpush1.bf16.msra.mxu0 %v443
  %462 = vmatprep.subr.bf16.mxu0 0
  %463 = vmatpush1.bf16.msra.mxu0 %v444
  %464 = vmatprep.subr.bf16.mxu0 0
  %465 = vmatpush1.bf16.msra.mxu0 %v445
  %466 = vmatprep.subr.bf16.mxu0 0
  %467 = vmatpush1.bf16.msra.mxu0 %v446
  %468 = vmatprep.subr.bf16.mxu0 0
  %469 = vmatpush1.bf16.msra.mxu0 %v447
  %470 = vmatprep.subr.bf16.mxu0 0
  %471 = vmatpush1.bf16.msra.mxu0 %v448
  %472 = vmatprep.subr.bf16.mxu0 0
  %473 = vmatpush1.bf16.msra.mxu0 %v449
  %474 = vmatprep.subr.bf16.mxu0 0
  %475 = vmatpush1.bf16.msra.mxu0 0
  %476 = vmatprep.subr.bf16.mxu0 0
  %477 = vmatpush1.bf16.msra.mxu0 0
  %478 = vmatprep.subr.bf16.mxu0 0
  %479 = vmatpush1.bf16.msra.mxu0 0
  %480 = vmatprep.subr.bf16.mxu0 0
  %481 = vmatpush1.bf16.msra.mxu0 0
  %482 = vmatprep.subr.bf16.mxu0 0
  %483 = vmatpush1.bf16.msra.mxu0 0
  %484 = vmatprep.subr.bf16.mxu0 0
  %485 = vmatpush1.bf16.msra.mxu0 0
  %486 = vmatprep.subr.bf16.mxu0 0
  %487 = vmatpush1.bf16.msra.mxu0 0
  %488 = vmatprep.subr.bf16.mxu0 0
  %489 = vmatpush1.bf16.msra.mxu0 0
  %490 = vmatprep.mubr.bf16.mxu0 0
  %491 = vmatmul.mubr.bf16.gmra.mrb[0].mxu0 %v393
  %v492 = vpop.f32.mrb[0].mxu0
  %v493 = vadd.f32 0.0, %v492
  %v494 = vpop.f32.mrb[0].mxu0
  %v495 = vpop.f32.mrb[0].mxu0
  %v496 = vpop.f32.mrb[0].mxu0
  %497 = vdwg.mxu0
  %s498 = scalar_lea.vmem %s3, 64
  %v499 = vld [vmem:[%s498] sm:$0xf]
  %v500 = vld [vmem:[%s498 + $0x4] sm:$0xf]
  %v501 = vld [vmem:[%s498 + $0x8] sm:$0xf]
  %v502 = vld [vmem:[%s498 + $0xc] sm:$0xf]
  %v503 = vld [vmem:[%s498 + $0x10] sm:$0xf]
  %v504 = vld [vmem:[%s498 + $0x14] sm:$0xf]
  %v505 = vld [vmem:[%s498 + $0x18] sm:$0xf]
  %v506 = vld [vmem:[%s498 + $0x1c] sm:$0xf]
  %v507 = vld [vmem:[%s498 + $0x20] sm:$0xf]
  %v508 = vld [vmem:[%s498 + $0x24] sm:$0xf]
  %v509 = vld [vmem:[%s498 + $0x28] sm:$0xf]
  %v510 = vld [vmem:[%s498 + $0x2c] sm:$0xf]
  %v511 = vld [vmem:[%s498 + $0x30] sm:$0xf]
  %v512 = vld [vmem:[%s498 + $0x34] sm:$0xf]
  %v513 = vld [vmem:[%s498 + $0x38] sm:$0xf]
  %v514 = vld [vmem:[%s498 + $0x3c] sm:$0xf]
  %v516 = vshrl.u32 %v393, 16
  %v535 = vunpack.c.l.b16 %v499
  %v536 = vunpack.c.l.b16 %v500
  %v537 = vunpack.c.l.b16 %v501
  %v538 = vunpack.c.l.b16 %v502
  %v539 = vunpack.c.l.b16 %v503
  %v540 = vunpack.c.l.b16 %v504
  %v541 = vunpack.c.l.b16 %v505
  %v542 = vunpack.c.l.b16 %v506
  %v543 = vunpack.c.l.b16 %v507
  %v544 = vunpack.c.l.b16 %v508
  %v545 = vunpack.c.l.b16 %v509
  %v546 = vunpack.c.l.b16 %v510
  %v547 = vunpack.c.l.b16 %v511
  %v548 = vunpack.c.l.b16 %v512
  %v549 = vunpack.c.l.b16 %v513
  %v550 = vunpack.c.l.b16 %v514
  %v551 = vpack.c.b16 %v536, %v535
  %v552 = vpack.c.b16 %v538, %v537
  %v553 = vpack.c.b16 %v540, %v539
  %v554 = vpack.c.b16 %v542, %v541
  %v555 = vpack.c.b16 %v544, %v543
  %v556 = vpack.c.b16 %v546, %v545
  %v557 = vpack.c.b16 %v548, %v547
  %v558 = vpack.c.b16 %v550, %v549
  %567 = vmatprep.subr.bf16.mxu0 0
  %568 = vmatpush1.bf16.msra.mxu0 %v551
  %569 = vmatprep.subr.bf16.mxu0 0
  %570 = vmatpush1.bf16.msra.mxu0 %v552
  %571 = vmatprep.subr.bf16.mxu0 0
  %572 = vmatpush1.bf16.msra.mxu0 %v553
  %573 = vmatprep.subr.bf16.mxu0 0
  %574 = vmatpush1.bf16.msra.mxu0 %v554
  %575 = vmatprep.subr.bf16.mxu0 0
  %576 = vmatpush1.bf16.msra.mxu0 %v555
  %577 = vmatprep.subr.bf16.mxu0 0
  %578 = vmatpush1.bf16.msra.mxu0 %v556
  %579 = vmatprep.subr.bf16.mxu0 0
  %580 = vmatpush1.bf16.msra.mxu0 %v557
  %581 = vmatprep.subr.bf16.mxu0 0
  %582 = vmatpush1.bf16.msra.mxu0 %v558
  %583 = vmatprep.subr.bf16.mxu0 0
  %584 = vmatpush1.bf16.msra.mxu0 0
  %585 = vmatprep.subr.bf16.mxu0 0
  %586 = vmatpush1.bf16.msra.mxu0 0
  %587 = vmatprep.subr.bf16.mxu0 0
  %588 = vmatpush1.bf16.msra.mxu0 0
  %589 = vmatprep.subr.bf16.mxu0 0
  %590 = vmatpush1.bf16.msra.mxu0 0
  %591 = vmatprep.subr.bf16.mxu0 0
  %592 = vmatpush1.bf16.msra.mxu0 0
  %593 = vmatprep.subr.bf16.mxu0 0
  %594 = vmatpush1.bf16.msra.mxu0 0
  %595 = vmatprep.subr.bf16.mxu0 0
  %596 = vmatpush1.bf16.msra.mxu0 0
  %597 = vmatprep.subr.bf16.mxu0 0
  %598 = vmatpush1.bf16.msra.mxu0 0
  %599 = vmatprep.mubr.bf16.mxu0 0
  %600 = vmatmul.mubr.bf16.gmra.mrb[0].mxu0 %v516
  %v601 = vpop.f32.mrb[0].mxu0
  %v602 = vadd.f32 0.0, %v601
  %v603 = vpop.f32.mrb[0].mxu0
  %v604 = vpop.f32.mrb[0].mxu0
  %v605 = vpop.f32.mrb[0].mxu0
  %606 = vdwg.mxu0
  %s607 = scalar_lea.vmem %s3, 128
  %v608 = vld [vmem:[%s607] sm:$0xf]
  %v609 = vld [vmem:[%s607 + $0x4] sm:$0xf]
  %v610 = vld [vmem:[%s607 + $0x8] sm:$0xf]
  %v611 = vld [vmem:[%s607 + $0xc] sm:$0xf]
  %v612 = vld [vmem:[%s607 + $0x10] sm:$0xf]
  %v613 = vld [vmem:[%s607 + $0x14] sm:$0xf]
  %v614 = vld [vmem:[%s607 + $0x18] sm:$0xf]
  %v615 = vld [vmem:[%s607 + $0x1c] sm:$0xf]
  %v616 = vld [vmem:[%s607 + $0x20] sm:$0xf]
  %v617 = vld [vmem:[%s607 + $0x24] sm:$0xf]
  %v618 = vld [vmem:[%s607 + $0x28] sm:$0xf]
  %v619 = vld [vmem:[%s607 + $0x2c] sm:$0xf]
  %v620 = vld [vmem:[%s607 + $0x30] sm:$0xf]
  %v621 = vld [vmem:[%s607 + $0x34] sm:$0xf]
  %v622 = vld [vmem:[%s607 + $0x38] sm:$0xf]
  %v623 = vld [vmem:[%s607 + $0x3c] sm:$0xf]
  %v625 = vrot.slane %v393, 1
  %v643 = vunpack.c.l.b16 %v608
  %v644 = vunpack.c.l.b16 %v609
  %v645 = vunpack.c.l.b16 %v610
  %v646 = vunpack.c.l.b16 %v611
  %v647 = vunpack.c.l.b16 %v612
  %v648 = vunpack.c.l.b16 %v613
  %v649 = vunpack.c.l.b16 %v614
  %v650 = vunpack.c.l.b16 %v615
  %v651 = vunpack.c.l.b16 %v616
  %v652 = vunpack.c.l.b16 %v617
  %v653 = vunpack.c.l.b16 %v618
  %v654 = vunpack.c.l.b16 %v619
  %v655 = vunpack.c.l.b16 %v620
  %v656 = vunpack.c.l.b16 %v621
  %v657 = vunpack.c.l.b16 %v622
  %v658 = vunpack.c.l.b16 %v623
  %v659 = vpack.c.b16 %v644, %v643
  %v660 = vpack.c.b16 %v646, %v645
  %v661 = vpack.c.b16 %v648, %v647
  %v662 = vpack.c.b16 %v650, %v649
  %v663 = vpack.c.b16 %v652, %v651
  %v664 = vpack.c.b16 %v654, %v653
  %v665 = vpack.c.b16 %v656, %v655
  %v666 = vpack.c.b16 %v658, %v657
  %675 = vmatprep.subr.bf16.mxu0 0
  %676 = vmatpush1.bf16.msra.mxu0 %v659
  %677 = vmatprep.subr.bf16.mxu0 0
  %678 = vmatpush1.bf16.msra.mxu0 %v660
  %679 = vmatprep.subr.bf16.mxu0 0
  %680 = vmatpush1.bf16.msra.mxu0 %v661
  %681 = vmatprep.subr.bf16.mxu0 0
  %682 = vmatpush1.bf16.msra.mxu0 %v662
  %683 = vmatprep.subr.bf16.mxu0 0
  %684 = vmatpush1.bf16.msra.mxu0 %v663
  %685 = vmatprep.subr.bf16.mxu0 0
  %686 = vmatpush1.bf16.msra.mxu0 %v664
  %687 = vmatprep.subr.bf16.mxu0 0
  %688 = vmatpush1.bf16.msra.mxu0 %v665
  %689 = vmatprep.subr.bf16.mxu0 0
  %690 = vmatpush1.bf16.msra.mxu0 %v666
  %691 = vmatprep.subr.bf16.mxu0 0
  %692 = vmatpush1.bf16.msra.mxu0 0
  %693 = vmatprep.subr.bf16.mxu0 0
  %694 = vmatpush1.bf16.msra.mxu0 0
  %695 = vmatprep.subr.bf16.mxu0 0
  %696 = vmatpush1.bf16.msra.mxu0 0
  %697 = vmatprep.subr.bf16.mxu0 0
  %698 = vmatpush1.bf16.msra.mxu0 0
  %699 = vmatprep.subr.bf16.mxu0 0
  %700 = vmatpush1.bf16.msra.mxu0 0
  %701 = vmatprep.subr.bf16.mxu0 0
  %702 = vmatpush1.bf16.msra.mxu0 0
  %703 = vmatprep.subr.bf16.mxu0 0
  %704 = vmatpush1.bf16.msra.mxu0 0
  %705 = vmatprep.subr.bf16.mxu0 0
  %706 = vmatpush1.bf16.msra.mxu0 0
  %707 = vmatprep.mubr.bf16.mxu0 0
  %708 = vmatmul.mubr.bf16.gmra.mrb[0].mxu0 %v625
  %v709 = vpop.f32.mrb[0].mxu0
  %v710 = vadd.f32 0.0, %v709
  %v711 = vpop.f32.mrb[0].mxu0
  %v712 = vpop.f32.mrb[0].mxu0
  %v713 = vpop.f32.mrb[0].mxu0
  %714 = vdwg.mxu0
  %s715 = scalar_lea.vmem %s3, 192
  %v716 = vld [vmem:[%s715] sm:$0xf]
  %v717 = vld [vmem:[%s715 + $0x4] sm:$0xf]
  %v718 = vld [vmem:[%s715 + $0x8] sm:$0xf]
  %v719 = vld [vmem:[%s715 + $0xc] sm:$0xf]
  %v720 = vld [vmem:[%s715 + $0x10] sm:$0xf]
  %v721 = vld [vmem:[%s715 + $0x14] sm:$0xf]
  %v722 = vld [vmem:[%s715 + $0x18] sm:$0xf]
  %v723 = vld [vmem:[%s715 + $0x1c] sm:$0xf]
  %v724 = vld [vmem:[%s715 + $0x20] sm:$0xf]
  %v725 = vld [vmem:[%s715 + $0x24] sm:$0xf]
  %v726 = vld [vmem:[%s715 + $0x28] sm:$0xf]
  %v727 = vld [vmem:[%s715 + $0x2c] sm:$0xf]
  %v728 = vld [vmem:[%s715 + $0x30] sm:$0xf]
  %v729 = vld [vmem:[%s715 + $0x34] sm:$0xf]
  %v730 = vld [vmem:[%s715 + $0x38] sm:$0xf]
  %v731 = vld [vmem:[%s715 + $0x3c] sm:$0xf]
  %v732 = vrot.slane %v516, 1
  %v750 = vunpack.c.l.b16 %v716
  %v751 = vunpack.c.l.b16 %v717
  %v752 = vunpack.c.l.b16 %v718
  %v753 = vunpack.c.l.b16 %v719
  %v754 = vunpack.c.l.b16 %v720
  %v755 = vunpack.c.l.b16 %v721
  %v756 = vunpack.c.l.b16 %v722
  %v757 = vunpack.c.l.b16 %v723
  %v758 = vunpack.c.l.b16 %v724
  %v759 = vunpack.c.l.b16 %v725
  %v760 = vunpack.c.l.b16 %v726
  %v761 = vunpack.c.l.b16 %v727
  %v762 = vunpack.c.l.b16 %v728
  %v763 = vunpack.c.l.b16 %v729
  %v764 = vunpack.c.l.b16 %v730
  %v765 = vunpack.c.l.b16 %v731
  %v766 = vpack.c.b16 %v751, %v750
  %v767 = vpack.c.b16 %v753, %v752
  %v768 = vpack.c.b16 %v755, %v754
  %v769 = vpack.c.b16 %v757, %v756
  %v770 = vpack.c.b16 %v759, %v758
  %v771 = vpack.c.b16 %v761, %v760
  %v772 = vpack.c.b16 %v763, %v762
  %v773 = vpack.c.b16 %v765, %v764
  %782 = vmatprep.subr.bf16.mxu0 0
  %783 = vmatpush1.bf16.msra.mxu0 %v766
  %784 = vmatprep.subr.bf16.mxu0 0
  %785 = vmatpush1.bf16.msra.mxu0 %v767
  %786 = vmatprep.subr.bf16.mxu0 0
  %787 = vmatpush1.bf16.msra.mxu0 %v768
  %788 = vmatprep.subr.bf16.mxu0 0
  %789 = vmatpush1.bf16.msra.mxu0 %v769
  %790 = vmatprep.subr.bf16.mxu0 0
  %791 = vmatpush1.bf16.msra.mxu0 %v770
  %792 = vmatprep.subr.bf16.mxu0 0
  %793 = vmatpush1.bf16.msra.mxu0 %v771
  %794 = vmatprep.subr.bf16.mxu0 0
  %795 = vmatpush1.bf16.msra.mxu0 %v772
  %796 = vmatprep.subr.bf16.mxu0 0
  %797 = vmatpush1.bf16.msra.mxu0 %v773
  %798 = vmatprep.subr.bf16.mxu0 0
  %799 = vmatpush1.bf16.msra.mxu0 0
  %800 = vmatprep.subr.bf16.mxu0 0
  %801 = vmatpush1.bf16.msra.mxu0 0
  %802 = vmatprep.subr.bf16.mxu0 0
  %803 = vmatpush1.bf16.msra.mxu0 0
  %804 = vmatprep.subr.bf16.mxu0 0
  %805 = vmatpush1.bf16.msra.mxu0 0
  %806 = vmatprep.subr.bf16.mxu0 0
  %807 = vmatpush1.bf16.msra.mxu0 0
  %808 = vmatprep.subr.bf16.mxu0 0
  %809 = vmatpush1.bf16.msra.mxu0 0
  %810 = vmatprep.subr.bf16.mxu0 0
  %811 = vmatpush1.bf16.msra.mxu0 0
  %812 = vmatprep.subr.bf16.mxu0 0
  %813 = vmatpush1.bf16.msra.mxu0 0
  %814 = vmatprep.mubr.bf16.mxu0 0
  %815 = vmatmul.mubr.bf16.gmra.mrb[0].mxu0 %v732
  %v816 = vpop.f32.mrb[0].mxu0
  %v817 = vadd.f32 0.0, %v816
  %v818 = vpop.f32.mrb[0].mxu0
  %v819 = vpop.f32.mrb[0].mxu0
  %v820 = vpop.f32.mrb[0].mxu0
  %821 = vdwg.mxu0
  %s822 = scalar_lea.vmem %s3, 256
  %v823 = vld [vmem:[%s822] sm:$0xf]
  %v824 = vld [vmem:[%s822 + $0x4] sm:$0xf]
  %v825 = vld [vmem:[%s822 + $0x8] sm:$0xf]
  %v826 = vld [vmem:[%s822 + $0xc] sm:$0xf]
  %v827 = vld [vmem:[%s822 + $0x10] sm:$0xf]
  %v828 = vld [vmem:[%s822 + $0x14] sm:$0xf]
  %v829 = vld [vmem:[%s822 + $0x18] sm:$0xf]
  %v830 = vld [vmem:[%s822 + $0x1c] sm:$0xf]
  %v831 = vld [vmem:[%s822 + $0x20] sm:$0xf]
  %v832 = vld [vmem:[%s822 + $0x24] sm:$0xf]
  %v833 = vld [vmem:[%s822 + $0x28] sm:$0xf]
  %v834 = vld [vmem:[%s822 + $0x2c] sm:$0xf]
  %v835 = vld [vmem:[%s822 + $0x30] sm:$0xf]
  %v836 = vld [vmem:[%s822 + $0x34] sm:$0xf]
  %v837 = vld [vmem:[%s822 + $0x38] sm:$0xf]
  %v838 = vld [vmem:[%s822 + $0x3c] sm:$0xf]
  %v839 = vrot.slane %v393, 2
  %v857 = vunpack.c.l.b16 %v823
  %v858 = vunpack.c.l.b16 %v824
  %v859 = vunpack.c.l.b16 %v825
  %v860 = vunpack.c.l.b16 %v826
  %v861 = vunpack.c.l.b16 %v827
  %v862 = vunpack.c.l.b16 %v828
  %v863 = vunpack.c.l.b16 %v829
  %v864 = vunpack.c.l.b16 %v830
  %v865 = vunpack.c.l.b16 %v831
  %v866 = vunpack.c.l.b16 %v832
  %v867 = vunpack.c.l.b16 %v833
  %v868 = vunpack.c.l.b16 %v834
  %v869 = vunpack.c.l.b16 %v835
  %v870 = vunpack.c.l.b16 %v836
  %v871 = vunpack.c.l.b16 %v837
  %v872 = vunpack.c.l.b16 %v838
  %v873 = vpack.c.b16 %v858, %v857
  %v874 = vpack.c.b16 %v860, %v859
  %v875 = vpack.c.b16 %v862, %v861
  %v876 = vpack.c.b16 %v864, %v863
  %v877 = vpack.c.b16 %v866, %v865
  %v878 = vpack.c.b16 %v868, %v867
  %v879 = vpack.c.b16 %v870, %v869
  %v880 = vpack.c.b16 %v872, %v871
  %889 = vmatprep.subr.bf16.mxu0 0
  %890 = vmatpush1.bf16.msra.mxu0 %v873
  %891 = vmatprep.subr.bf16.mxu0 0
  %892 = vmatpush1.bf16.msra.mxu0 %v874
  %893 = vmatprep.subr.bf16.mxu0 0
  %894 = vmatpush1.bf16.msra.mxu0 %v875
  %895 = vmatprep.subr.bf16.mxu0 0
  %896 = vmatpush1.bf16.msra.mxu0 %v876
  %897 = vmatprep.subr.bf16.mxu0 0
  %898 = vmatpush1.bf16.msra.mxu0 %v877
  %899 = vmatprep.subr.bf16.mxu0 0
  %900 = vmatpush1.bf16.msra.mxu0 %v878
  %901 = vmatprep.subr.bf16.mxu0 0
  %902 = vmatpush1.bf16.msra.mxu0 %v879
  %903 = vmatprep.subr.bf16.mxu0 0
  %904 = vmatpush1.bf16.msra.mxu0 %v880
  %905 = vmatprep.subr.bf16.mxu0 0
  %906 = vmatpush1.bf16.msra.mxu0 0
  %907 = vmatprep.subr.bf16.mxu0 0
  %908 = vmatpush1.bf16.msra.mxu0 0
  %909 = vmatprep.subr.bf16.mxu0 0
  %910 = vmatpush1.bf16.msra.mxu0 0
  %911 = vmatprep.subr.bf16.mxu0 0
  %912 = vmatpush1.bf16.msra.mxu0 0
  %913 = vmatprep.subr.bf16.mxu0 0
  %914 = vmatpush1.bf16.msra.mxu0 0
  %915 = vmatprep.subr.bf16.mxu0 0
  %916 = vmatpush1.bf16.msra.mxu0 0
  %917 = vmatprep.subr.bf16.mxu0 0
  %918 = vmatpush1.bf16.msra.mxu0 0
  %919 = vmatprep.subr.bf16.mxu0 0
  %920 = vmatpush1.bf16.msra.mxu0 0
  %921 = vmatprep.mubr.bf16.mxu0 0
  %922 = vmatmul.mubr.bf16.gmra.mrb[0].mxu0 %v839
  %v923 = vpop.f32.mrb[0].mxu0
  %v924 = vadd.f32 0.0, %v923
  %v925 = vpop.f32.mrb[0].mxu0
  %v926 = vpop.f32.mrb[0].mxu0
  %v927 = vpop.f32.mrb[0].mxu0
  %928 = vdwg.mxu0
  %s929 = scalar_lea.vmem %s3, 320
  %v930 = vld [vmem:[%s929] sm:$0xf]
  %v931 = vld [vmem:[%s929 + $0x4] sm:$0xf]
  %v932 = vld [vmem:[%s929 + $0x8] sm:$0xf]
  %v933 = vld [vmem:[%s929 + $0xc] sm:$0xf]
  %v934 = vld [vmem:[%s929 + $0x10] sm:$0xf]
  %v935 = vld [vmem:[%s929 + $0x14] sm:$0xf]
  %v936 = vld [vmem:[%s929 + $0x18] sm:$0xf]
  %v937 = vld [vmem:[%s929 + $0x1c] sm:$0xf]
  %v938 = vld [vmem:[%s929 + $0x20] sm:$0xf]
  %v939 = vld [vmem:[%s929 + $0x24] sm:$0xf]
  %v940 = vld [vmem:[%s929 + $0x28] sm:$0xf]
  %v941 = vld [vmem:[%s929 + $0x2c] sm:$0xf]
  %v942 = vld [vmem:[%s929 + $0x30] sm:$0xf]
  %v943 = vld [vmem:[%s929 + $0x34] sm:$0xf]
  %v944 = vld [vmem:[%s929 + $0x38] sm:$0xf]
  %v945 = vld [vmem:[%s929 + $0x3c] sm:$0xf]
  %v946 = vrot.slane %v516, 2
  %v964 = vunpack.c.l.b16 %v930
  %v965 = vunpack.c.l.b16 %v931
  %v966 = vunpack.c.l.b16 %v932
  %v967 = vunpack.c.l.b16 %v933
  %v968 = vunpack.c.l.b16 %v934
  %v969 = vunpack.c.l.b16 %v935
  %v970 = vunpack.c.l.b16 %v936
  %v971 = vunpack.c.l.b16 %v937
  %v972 = vunpack.c.l.b16 %v938
  %v973 = vunpack.c.l.b16 %v939
  %v974 = vunpack.c.l.b16 %v940
  %v975 = vunpack.c.l.b16 %v941
  %v976 = vunpack.c.l.b16 %v942
  %v977 = vunpack.c.l.b16 %v943
  %v978 = vunpack.c.l.b16 %v944
  %v979 = vunpack.c.l.b16 %v945
  %v980 = vpack.c.b16 %v965, %v964
  %v981 = vpack.c.b16 %v967, %v966
  %v982 = vpack.c.b16 %v969, %v968
  %v983 = vpack.c.b16 %v971, %v970
  %v984 = vpack.c.b16 %v973, %v972
  %v985 = vpack.c.b16 %v975, %v974
  %v986 = vpack.c.b16 %v977, %v976
  %v987 = vpack.c.b16 %v979, %v978
  %996 = vmatprep.subr.bf16.mxu0 0
  %997 = vmatpush1.bf16.msra.mxu0 %v980
  %998 = vmatprep.subr.bf16.mxu0 0
  %999 = vmatpush1.bf16.msra.mxu0 %v981
  %1000 = vmatprep.subr.bf16.mxu0 0
  %1001 = vmatpush1.bf16.msra.mxu0 %v982
  %1002 = vmatprep.subr.bf16.mxu0 0
  %1003 = vmatpush1.bf16.msra.mxu0 %v983
  %1004 = vmatprep.subr.bf16.mxu0 0
  %1005 = vmatpush1.bf16.msra.mxu0 %v984
  %1006 = vmatprep.subr.bf16.mxu0 0
  %1007 = vmatpush1.bf16.msra.mxu0 %v985
  %1008 = vmatprep.subr.bf16.mxu0 0
  %1009 = vmatpush1.bf16.msra.mxu0 %v986
  %1010 = vmatprep.subr.bf16.mxu0 0
  %1011 = vmatpush1.bf16.msra.mxu0 %v987
  %1012 = vmatprep.subr.bf16.mxu0 0
  %1013 = vmatpush1.bf16.msra.mxu0 0
  %1014 = vmatprep.subr.bf16.mxu0 0
  %1015 = vmatpush1.bf16.msra.mxu0 0
  %1016 = vmatprep.subr.bf16.mxu0 0
  %1017 = vmatpush1.bf16.msra.mxu0 0
  %1018 = vmatprep.subr.bf16.mxu0 0
  %1019 = vmatpush1.bf16.msra.mxu0 0
  %1020 = vmatprep.subr.bf16.mxu0 0
  %1021 = vmatpush1.bf16.msra.mxu0 0
  %1022 = vmatprep.subr.bf16.mxu0 0
  %1023 = vmatpush1.bf16.msra.mxu0 0
  %1024 = vmatprep.subr.bf16.mxu0 0
  %1025 = vmatpush1.bf16.msra.mxu0 0
  %1026 = vmatprep.subr.bf16.mxu0 0
  %1027 = vmatpush1.bf16.msra.mxu0 0
  %1028 = vmatprep.mubr.bf16.mxu0 0
  %1029 = vmatmul.mubr.bf16.gmra.mrb[0].mxu0 %v946
  %v1030 = vpop.f32.mrb[0].mxu0
  %v1031 = vadd.f32 0.0, %v1030
  %v1032 = vpop.f32.mrb[0].mxu0
  %v1033 = vpop.f32.mrb[0].mxu0
  %v1034 = vpop.f32.mrb[0].mxu0
  %1035 = vdwg.mxu0
  %s1036 = scalar_lea.vmem %s3, 384
  %v1037 = vld [vmem:[%s1036] sm:$0xf]
  %v1038 = vld [vmem:[%s1036 + $0x4] sm:$0xf]
  %v1039 = vld [vmem:[%s1036 + $0x8] sm:$0xf]
  %v1040 = vld [vmem:[%s1036 + $0xc] sm:$0xf]
  %v1041 = vld [vmem:[%s1036 + $0x10] sm:$0xf]
  %v1042 = vld [vmem:[%s1036 + $0x14] sm:$0xf]
  %v1043 = vld [vmem:[%s1036 + $0x18] sm:$0xf]
  %v1044 = vld [vmem:[%s1036 + $0x1c] sm:$0xf]
  %v1045 = vld [vmem:[%s1036 + $0x20] sm:$0xf]
  %v1046 = vld [vmem:[%s1036 + $0x24] sm:$0xf]
  %v1047 = vld [vmem:[%s1036 + $0x28] sm:$0xf]
  %v1048 = vld [vmem:[%s1036 + $0x2c] sm:$0xf]
  %v1049 = vld [vmem:[%s1036 + $0x30] sm:$0xf]
  %v1050 = vld [vmem:[%s1036 + $0x34] sm:$0xf]
  %v1051 = vld [vmem:[%s1036 + $0x38] sm:$0xf]
  %v1052 = vld [vmem:[%s1036 + $0x3c] sm:$0xf]
  %v1053 = vrot.slane %v393, 3
  %v1071 = vunpack.c.l.b16 %v1037
  %v1072 = vunpack.c.l.b16 %v1038
  %v1073 = vunpack.c.l.b16 %v1039
  %v1074 = vunpack.c.l.b16 %v1040
  %v1075 = vunpack.c.l.b16 %v1041
  %v1076 = vunpack.c.l.b16 %v1042
  %v1077 = vunpack.c.l.b16 %v1043
  %v1078 = vunpack.c.l.b16 %v1044
  %v1079 = vunpack.c.l.b16 %v1045
  %v1080 = vunpack.c.l.b16 %v1046
  %v1081 = vunpack.c.l.b16 %v1047
  %v1082 = vunpack.c.l.b16 %v1048
  %v1083 = vunpack.c.l.b16 %v1049
  %v1084 = vunpack.c.l.b16 %v1050
  %v1085 = vunpack.c.l.b16 %v1051
  %v1086 = vunpack.c.l.b16 %v1052
  %v1087 = vpack.c.b16 %v1072, %v1071
  %v1088 = vpack.c.b16 %v1074, %v1073
  %v1089 = vpack.c.b16 %v1076, %v1075
  %v1090 = vpack.c.b16 %v1078, %v1077
  %v1091 = vpack.c.b16 %v1080, %v1079
  %v1092 = vpack.c.b16 %v1082, %v1081
  %v1093 = vpack.c.b16 %v1084, %v1083
  %v1094 = vpack.c.b16 %v1086, %v1085
  %1103 = vmatprep.subr.bf16.mxu0 0
  %1104 = vmatpush1.bf16.msra.mxu0 %v1087
  %1105 = vmatprep.subr.bf16.mxu0 0
  %1106 = vmatpush1.bf16.msra.mxu0 %v1088
  %1107 = vmatprep.subr.bf16.mxu0 0
  %1108 = vmatpush1.bf16.msra.mxu0 %v1089
  %1109 = vmatprep.subr.bf16.mxu0 0
  %1110 = vmatpush1.bf16.msra.mxu0 %v1090
  %1111 = vmatprep.subr.bf16.mxu0 0
  %1112 = vmatpush1.bf16.msra.mxu0 %v1091
  %1113 = vmatprep.subr.bf16.mxu0 0
  %1114 = vmatpush1.bf16.msra.mxu0 %v1092
  %1115 = vmatprep.subr.bf16.mxu0 0
  %1116 = vmatpush1.bf16.msra.mxu0 %v1093
  %1117 = vmatprep.subr.bf16.mxu0 0
  %1118 = vmatpush1.bf16.msra.mxu0 %v1094
  %1119 = vmatprep.subr.bf16.mxu0 0
  %1120 = vmatpush1.bf16.msra.mxu0 0
  %1121 = vmatprep.subr.bf16.mxu0 0
  %1122 = vmatpush1.bf16.msra.mxu0 0
  %1123 = vmatprep.subr.bf16.mxu0 0
  %1124 = vmatpush1.bf16.msra.mxu0 0
  %1125 = vmatprep.subr.bf16.mxu0 0
  %1126 = vmatpush1.bf16.msra.mxu0 0
  %1127 = vmatprep.subr.bf16.mxu0 0
  %1128 = vmatpush1.bf16.msra.mxu0 0
  %1129 = vmatprep.subr.bf16.mxu0 0
  %1130 = vmatpush1.bf16.msra.mxu0 0
  %1131 = vmatprep.subr.bf16.mxu0 0
  %1132 = vmatpush1.bf16.msra.mxu0 0
  %1133 = vmatprep.subr.bf16.mxu0 0
  %1134 = vmatpush1.bf16.msra.mxu0 0
  %1135 = vmatprep.mubr.bf16.mxu0 0
  %1136 = vmatmul.mubr.bf16.gmra.mrb[0].mxu0 %v1053
  %v1137 = vpop.f32.mrb[0].mxu0
  %v1138 = vadd.f32 0.0, %v1137
  %v1139 = vpop.f32.mrb[0].mxu0
  %v1140 = vpop.f32.mrb[0].mxu0
  %v1141 = vpop.f32.mrb[0].mxu0
  %1142 = vdwg.mxu0
  %s1143 = scalar_lea.vmem %s3, 448
  %v1144 = vld [vmem:[%s1143] sm:$0xf]
  %v1145 = vld [vmem:[%s1143 + $0x4] sm:$0xf]
  %v1146 = vld [vmem:[%s1143 + $0x8] sm:$0xf]
  %v1147 = vld [vmem:[%s1143 + $0xc] sm:$0xf]
  %v1148 = vld [vmem:[%s1143 + $0x10] sm:$0xf]
  %v1149 = vld [vmem:[%s1143 + $0x14] sm:$0xf]
  %v1150 = vld [vmem:[%s1143 + $0x18] sm:$0xf]
  %v1151 = vld [vmem:[%s1143 + $0x1c] sm:$0xf]
  %v1152 = vld [vmem:[%s1143 + $0x20] sm:$0xf]
  %v1153 = vld [vmem:[%s1143 + $0x24] sm:$0xf]
  %v1154 = vld [vmem:[%s1143 + $0x28] sm:$0xf]
  %v1155 = vld [vmem:[%s1143 + $0x2c] sm:$0xf]
  %v1156 = vld [vmem:[%s1143 + $0x30] sm:$0xf]
  %v1157 = vld [vmem:[%s1143 + $0x34] sm:$0xf]
  %v1158 = vld [vmem:[%s1143 + $0x38] sm:$0xf]
  %v1159 = vld [vmem:[%s1143 + $0x3c] sm:$0xf]
  %v1160 = vrot.slane %v516, 3
  %v1178 = vunpack.c.l.b16 %v1144
  %v1179 = vunpack.c.l.b16 %v1145
  %v1180 = vunpack.c.l.b16 %v1146
  %v1181 = vunpack.c.l.b16 %v1147
  %v1182 = vunpack.c.l.b16 %v1148
  %v1183 = vunpack.c.l.b16 %v1149
  %v1184 = vunpack.c.l.b16 %v1150
  %v1185 = vunpack.c.l.b16 %v1151
  %v1186 = vunpack.c.l.b16 %v1152
  %v1187 = vunpack.c.l.b16 %v1153
  %v1188 = vunpack.c.l.b16 %v1154
  %v1189 = vunpack.c.l.b16 %v1155
  %v1190 = vunpack.c.l.b16 %v1156
  %v1191 = vunpack.c.l.b16 %v1157
  %v1192 = vunpack.c.l.b16 %v1158
  %v1193 = vunpack.c.l.b16 %v1159
  %v1194 = vpack.c.b16 %v1179, %v1178
  %v1195 = vpack.c.b16 %v1181, %v1180
  %v1196 = vpack.c.b16 %v1183, %v1182
  %v1197 = vpack.c.b16 %v1185, %v1184
  %v1198 = vpack.c.b16 %v1187, %v1186
  %v1199 = vpack.c.b16 %v1189, %v1188
  %v1200 = vpack.c.b16 %v1191, %v1190
  %v1201 = vpack.c.b16 %v1193, %v1192
  %1210 = vmatprep.subr.bf16.mxu0 0
  %1211 = vmatpush1.bf16.msra.mxu0 %v1194
  %1212 = vmatprep.subr.bf16.mxu0 0
  %1213 = vmatpush1.bf16.msra.mxu0 %v1195
  %1214 = vmatprep.subr.bf16.mxu0 0
  %1215 = vmatpush1.bf16.msra.mxu0 %v1196
  %1216 = vmatprep.subr.bf16.mxu0 0
  %1217 = vmatpush1.bf16.msra.mxu0 %v1197
  %1218 = vmatprep.subr.bf16.mxu0 0
  %1219 = vmatpush1.bf16.msra.mxu0 %v1198
  %1220 = vmatprep.subr.bf16.mxu0 0
  %1221 = vmatpush1.bf16.msra.mxu0 %v1199
  %1222 = vmatprep.subr.bf16.mxu0 0
  %1223 = vmatpush1.bf16.msra.mxu0 %v1200
  %1224 = vmatprep.subr.bf16.mxu0 0
  %1225 = vmatpush1.bf16.msra.mxu0 %v1201
  %1226 = vmatprep.subr.bf16.mxu0 0
  %1227 = vmatpush1.bf16.msra.mxu0 0
  %1228 = vmatprep.subr.bf16.mxu0 0
  %1229 = vmatpush1.bf16.msra.mxu0 0
  %1230 = vmatprep.subr.bf16.mxu0 0
  %1231 = vmatpush1.bf16.msra.mxu0 0
  %1232 = vmatprep.subr.bf16.mxu0 0
  %1233 = vmatpush1.bf16.msra.mxu0 0
  %1234 = vmatprep.subr.bf16.mxu0 0
  %1235 = vmatpush1.bf16.msra.mxu0 0
  %1236 = vmatprep.subr.bf16.mxu0 0
  %1237 = vmatpush1.bf16.msra.mxu0 0
  %1238 = vmatprep.subr.bf16.mxu0 0
  %1239 = vmatpush1.bf16.msra.mxu0 0
  %1240 = vmatprep.subr.bf16.mxu0 0
  %1241 = vmatpush1.bf16.msra.mxu0 0
  %1242 = vmatprep.mubr.bf16.mxu0 0
  %1243 = vmatmul.mubr.bf16.gmra.mrb[0].mxu0 %v1160
  %v1244 = vpop.f32.mrb[0].mxu0
  %v1245 = vadd.f32 0.0, %v1244
  %v1246 = vpop.f32.mrb[0].mxu0
  %v1247 = vpop.f32.mrb[0].mxu0
  %v1248 = vpop.f32.mrb[0].mxu0
  %1249 = vdwg.mxu0
  %v1251 = vrot.slane %v602, 7
  %v1254 = vrot.slane %v710, 6
  %v1257 = vrot.slane %v817, 5
  %v1260 = vrot.slane %v924, 4
  %v1263 = vrot.slane %v1031, 3
  %v1266 = vrot.slane %v1138, 2
  %v1269 = vrot.slane %v1245, 1
  %vm1271 = vcmask 1040384
  %v1272 = vsel %vm1271, %v493, %v1251
  %vm1273 = vcmask 1041408
  %v1274 = vsel %vm1273, %v1272, %v1254
  %vm1275 = vcmask 1042432
  %v1276 = vsel %vm1275, %v1274, %v1257
  %vm1277 = vcmask 1043456
  %v1278 = vsel %vm1277, %v1276, %v1260
  %vm1279 = vcmask 1044480
  %v1280 = vsel %vm1279, %v1278, %v1263
  %vm1281 = vcmask 1045504
  %v1282 = vsel %vm1281, %v1280, %v1266
  %vm1283 = vcmask 1046528
  %v1284 = vsel %vm1283, %v1282, %v1269
  %v1285 = vpack.c.bf16 %v1284, %v1284
  %v1286 = vld [vmem:[%s8] sm:$0xf]
  %v1287 = vld [vmem:[%s8 + $0x4] sm:$0xf]
  %v1288 = vld [vmem:[%s8 + $0x8] sm:$0xf]
  %v1289 = vld [vmem:[%s8 + $0xc] sm:$0xf]
  %v1290 = vld [vmem:[%s8 + $0x10] sm:$0xf]
  %v1291 = vld [vmem:[%s8 + $0x14] sm:$0xf]
  %v1292 = vld [vmem:[%s8 + $0x18] sm:$0xf]
  %v1293 = vld [vmem:[%s8 + $0x1c] sm:$0xf]
  %v1302 = vunpack.c.l.b16 %v1286
  %v1303 = vunpack.c.l.b16 %v1287
  %v1304 = vunpack.c.l.b16 %v1288
  %v1305 = vunpack.c.l.b16 %v1289
  %v1306 = vunpack.c.l.b16 %v1290
  %v1307 = vunpack.c.l.b16 %v1291
  %v1308 = vunpack.c.l.b16 %v1292
  %v1309 = vunpack.c.l.b16 %v1293
  %v1310 = vpack.c.b16 %v1303, %v1302
  %v1311 = vpack.c.b16 %v1305, %v1304
  %v1312 = vpack.c.b16 %v1307, %v1306
  %v1313 = vpack.c.b16 %v1309, %v1308
  %vm1318 = vcmask 523264
  %v1320 = vsel %vm1318, %v1285, 0
  %1322 = vmatprep.subr.bf16.mxu0 0
  %1323 = vmatpush1.bf16.msra.mxu0 %v1310
  %1324 = vmatprep.subr.bf16.mxu0 0
  %1325 = vmatpush1.bf16.msra.mxu0 %v1311
  %1326 = vmatprep.subr.bf16.mxu0 0
  %1327 = vmatpush1.bf16.msra.mxu0 %v1312
  %1328 = vmatprep.subr.bf16.mxu0 0
  %1329 = vmatpush1.bf16.msra.mxu0 %v1313
  %1330 = vmatprep.subr.bf16.mxu0 0
  %1331 = vmatpush1.bf16.msra.mxu0 0
  %1332 = vmatprep.subr.bf16.mxu0 0
  %1333 = vmatpush1.bf16.msra.mxu0 0
  %1334 = vmatprep.subr.bf16.mxu0 0
  %1335 = vmatpush1.bf16.msra.mxu0 0
  %1336 = vmatprep.subr.bf16.mxu0 0
  %1337 = vmatpush1.bf16.msra.mxu0 0
  %1338 = vmatprep.subr.bf16.mxu0 0
  %1339 = vmatpush1.bf16.msra.mxu0 0
  %1340 = vmatprep.subr.bf16.mxu0 0
  %1341 = vmatpush1.bf16.msra.mxu0 0
  %1342 = vmatprep.subr.bf16.mxu0 0
  %1343 = vmatpush1.bf16.msra.mxu0 0
  %1344 = vmatprep.subr.bf16.mxu0 0
  %1345 = vmatpush1.bf16.msra.mxu0 0
  %1346 = vmatprep.subr.bf16.mxu0 0
  %1347 = vmatpush1.bf16.msra.mxu0 0
  %1348 = vmatprep.subr.bf16.mxu0 0
  %1349 = vmatpush1.bf16.msra.mxu0 0
  %1350 = vmatprep.subr.bf16.mxu0 0
  %1351 = vmatpush1.bf16.msra.mxu0 0
  %1352 = vmatprep.subr.bf16.mxu0 0
  %1353 = vmatpush1.bf16.msra.mxu0 0
  %1354 = vmatprep.mubr.bf16.mxu0 0
  %1355 = vmatmul.mubr.bf16.gmra.mrb[0].mxu0 %v1320
  %v1356 = vpop.f32.mrb[0].mxu0
  %v1357 = vadd.f32 0.0, %v1356
  %v1358 = vpop.f32.mrb[0].mxu0
  %v1359 = vpop.f32.mrb[0].mxu0
  %v1360 = vpop.f32.mrb[0].mxu0
  %1361 = vdwg.mxu0
  %v1362 = vadd.f32 %v121, %v1357
  %v1363 = vld [vmem:[%s9] sm:$0x1]
  %v1365 = vlaneseq
  %v1366 = vshrl.u32 %v1365, 7
  %v1367 = vsub.s32 0, %v1366
  %v1368 = vrot.slane %v1363, %v1367
  %v1370 = vadd.f32 %v1362, %v1368
  %v1371 = vmax.f32 %v1370, 0.0
  %v1372 = vpack.c.bf16 %v1371, %v1371
  %v1373 = vld [vmem:[%s10] sm:$0xff]
  %v1374 = vld [vmem:[%s10 + $0x8] sm:$0xff]
  %v1375 = vld [vmem:[%s10 + $0x10] sm:$0xff]
  %v1376 = vld [vmem:[%s10 + $0x18] sm:$0xff]
  %v1377 = vld [vmem:[%s10 + $0x20] sm:$0xff]
  %v1378 = vld [vmem:[%s10 + $0x28] sm:$0xff]
  %v1379 = vld [vmem:[%s10 + $0x30] sm:$0xff]
  %v1380 = vld [vmem:[%s10 + $0x38] sm:$0xff]
  %v1389 = vunpack.c.l.b16 %v1373
  %v1390 = vunpack.c.h.b16 %v1373
  %v1391 = vunpack.c.l.b16 %v1374
  %v1392 = vunpack.c.h.b16 %v1374
  %v1393 = vunpack.c.l.b16 %v1375
  %v1394 = vunpack.c.h.b16 %v1375
  %v1395 = vunpack.c.l.b16 %v1376
  %v1396 = vunpack.c.h.b16 %v1376
  %v1397 = vunpack.c.l.b16 %v1377
  %v1398 = vunpack.c.h.b16 %v1377
  %v1399 = vunpack.c.l.b16 %v1378
  %v1400 = vunpack.c.h.b16 %v1378
  %v1401 = vunpack.c.l.b16 %v1379
  %v1402 = vunpack.c.h.b16 %v1379
  %v1403 = vunpack.c.l.b16 %v1380
  %v1404 = vunpack.c.h.b16 %v1380
  %v1405 = vpack.c.b16 %v1393, %v1389
  %v1406 = vpack.c.b16 %v1394, %v1390
  %v1407 = vpack.c.b16 %v1395, %v1391
  %v1408 = vpack.c.b16 %v1396, %v1392
  %v1409 = vpack.c.b16 %v1401, %v1397
  %v1410 = vpack.c.b16 %v1402, %v1398
  %v1411 = vpack.c.b16 %v1403, %v1399
  %v1412 = vpack.c.b16 %v1404, %v1400
  %v1422 = vsel %vm80, %v1372, 0
  %1424 = vmatprep.subr.bf16.mxu0 %v1406
  %1425 = vmatpush1.bf16.msra.mxu0 %v1405
  %1426 = vmatprep.subr.bf16.mxu0 %v1410
  %1427 = vmatpush1.bf16.msra.mxu0 %v1409
  %1428 = vmatprep.subr.bf16.mxu0 0
  %1429 = vmatpush1.bf16.msra.mxu0 0
  %1430 = vmatprep.subr.bf16.mxu0 0
  %1431 = vmatpush1.bf16.msra.mxu0 0
  %1432 = vmatprep.subr.bf16.mxu0 0
  %1433 = vmatpush1.bf16.msra.mxu0 0
  %1434 = vmatprep.subr.bf16.mxu0 0
  %1435 = vmatpush1.bf16.msra.mxu0 0
  %1436 = vmatprep.subr.bf16.mxu0 0
  %1437 = vmatpush1.bf16.msra.mxu0 0
  %1438 = vmatprep.subr.bf16.mxu0 0
  %1439 = vmatpush1.bf16.msra.mxu0 0
  %1440 = vmatprep.subr.bf16.mxu0 0
  %1441 = vmatpush1.bf16.msra.mxu0 0
  %1442 = vmatprep.subr.bf16.mxu0 0
  %1443 = vmatpush1.bf16.msra.mxu0 0
  %1444 = vmatprep.subr.bf16.mxu0 0
  %1445 = vmatpush1.bf16.msra.mxu0 0
  %1446 = vmatprep.subr.bf16.mxu0 0
  %1447 = vmatpush1.bf16.msra.mxu0 0
  %1448 = vmatprep.subr.bf16.mxu0 0
  %1449 = vmatpush1.bf16.msra.mxu0 0
  %1450 = vmatprep.subr.bf16.mxu0 0
  %1451 = vmatpush1.bf16.msra.mxu0 0
  %1452 = vmatprep.subr.bf16.mxu0 0
  %1453 = vmatpush1.bf16.msra.mxu0 0
  %1454 = vmatprep.subr.bf16.mxu0 0
  %1455 = vmatpush1.bf16.msra.mxu0 0
  %1456 = vmatprep.mubr.bf16.mxu0 0
  %1457 = vmatmul.mubr.bf16.gmra.mrb[0].mxu0 %v1422
  %v1458 = vpop.f32.mrb[0].mxu0
  %v1459 = vadd.f32 %v229, %v1458
  %v1460 = vpop.f32.mrb[0].mxu0
  %v1461 = vadd.f32 %v268, %v1460
  %v1462 = vpop.f32.mrb[0].mxu0
  %v1463 = vpop.f32.mrb[0].mxu0
  %1464 = vdwg.mxu0
  %1465 = vmatprep.subr.bf16.mxu0 %v1408
  %1466 = vmatpush1.bf16.msra.mxu0 %v1407
  %1467 = vmatprep.subr.bf16.mxu0 %v1412
  %1468 = vmatpush1.bf16.msra.mxu0 %v1411
  %1469 = vmatprep.subr.bf16.mxu0 0
  %1470 = vmatpush1.bf16.msra.mxu0 0
  %1471 = vmatprep.subr.bf16.mxu0 0
  %1472 = vmatpush1.bf16.msra.mxu0 0
  %1473 = vmatprep.subr.bf16.mxu0 0
  %1474 = vmatpush1.bf16.msra.mxu0 0
  %1475 = vmatprep.subr.bf16.mxu0 0
  %1476 = vmatpush1.bf16.msra.mxu0 0
  %1477 = vmatprep.subr.bf16.mxu0 0
  %1478 = vmatpush1.bf16.msra.mxu0 0
  %1479 = vmatprep.subr.bf16.mxu0 0
  %1480 = vmatpush1.bf16.msra.mxu0 0
  %1481 = vmatprep.subr.bf16.mxu0 0
  %1482 = vmatpush1.bf16.msra.mxu0 0
  %1483 = vmatprep.subr.bf16.mxu0 0
  %1484 = vmatpush1.bf16.msra.mxu0 0
  %1485 = vmatprep.subr.bf16.mxu0 0
  %1486 = vmatpush1.bf16.msra.mxu0 0
  %1487 = vmatprep.subr.bf16.mxu0 0
  %1488 = vmatpush1.bf16.msra.mxu0 0
  %1489 = vmatprep.subr.bf16.mxu0 0
  %1490 = vmatpush1.bf16.msra.mxu0 0
  %1491 = vmatprep.subr.bf16.mxu0 0
  %1492 = vmatpush1.bf16.msra.mxu0 0
  %1493 = vmatprep.subr.bf16.mxu0 0
  %1494 = vmatpush1.bf16.msra.mxu0 0
  %1495 = vmatprep.subr.bf16.mxu0 0
  %1496 = vmatpush1.bf16.msra.mxu0 0
  %1497 = vmatprep.mubr.bf16.mxu0 0
  %1498 = vmatmul.mubr.bf16.gmra.mrb[0].mxu0 %v1422
  %v1499 = vpop.f32.mrb[0].mxu0
  %v1500 = vadd.f32 %v270, %v1499
  %v1501 = vpop.f32.mrb[0].mxu0
  %v1502 = vadd.f32 %v309, %v1501
  %v1503 = vpop.f32.mrb[0].mxu0
  %v1504 = vpop.f32.mrb[0].mxu0
  %1505 = vdwg.mxu0
  %v1506 = vld [vmem:[%s11] sm:$0xf]
  %v1508 = vlaneseq
  %v1509 = vshrl.u32 %v1508, 7
  %v1510 = vsub.s32 0, %v1509
  %v1511 = vrot.slane %v1506, %v1510
  %v1512 = vlaneseq
  %v1513 = vshrl.u32 %v1512, 7
  %v1514 = vsub.s32 1, %v1513
  %v1515 = vrot.slane %v1506, %v1514
  %v1516 = vlaneseq
  %v1517 = vshrl.u32 %v1516, 7
  %v1518 = vsub.s32 2, %v1517
  %v1519 = vrot.slane %v1506, %v1518
  %v1520 = vlaneseq
  %v1521 = vshrl.u32 %v1520, 7
  %v1522 = vsub.s32 3, %v1521
  %v1523 = vrot.slane %v1506, %v1522
  %v1528 = vadd.f32 %v1459, %v1511
  %v1529 = vadd.f32 %v1461, %v1515
  %v1530 = vadd.f32 %v1500, %v1519
  %v1531 = vadd.f32 %v1502, %v1523
  %v1532 = vmul.f32 %v1528, 0.5
  %v1533 = vtanh.pop %v1532
  %v1534 = vadd.f32 %v1533, 1.0
  %v1535 = vmul.f32 %v1534, 0.5
  %v1536 = vmul.f32 %v1529, 0.5
  %v1537 = vtanh.pop %v1536
  %v1538 = vadd.f32 %v1537, 1.0
  %v1539 = vmul.f32 %v1538, 0.5
  %v1540 = vtanh.pop %v1530
  %v1541 = vmul.f32 %v1531, 0.5
  %v1542 = vtanh.pop %v1541
  %v1543 = vadd.f32 %v1542, 1.0
  %v1544 = vmul.f32 %v1543, 0.5
  %v1545 = vmul.f32 %v1539, %v53
  %v1546 = vmul.f32 %v1535, %v1540
  %v1547 = vadd.f32 %v1545, %v1546
  %v1548 = vtanh.pop %v1547
  %v1549 = vmul.f32 %v1544, %v1548
  %1551 = vrot.lane.b32.xlu0 %v1547, 32
  %v1552 = vpop.permute.xlu0 %1551
  %v1554 = vsel %vm80, %v1549, %v1552
  %v1555 = vsel %vm1318, %v1554, 0.0
  %1556 = vst [vmem:[%s15] sm:$0xff] %v1555
  %v1557 = vpack.c.bf16 %v1549, %v1549
  %v1558 = vld [vmem:[%s12] sm:$0xf]
  %v1559 = vld [vmem:[%s12 + $0x4] sm:$0xf]
  %v1560 = vld [vmem:[%s12 + $0x8] sm:$0xf]
  %v1561 = vld [vmem:[%s12 + $0xc] sm:$0xf]
  %v1562 = vld [vmem:[%s13] sm:$0x1]
  %v1564 = vlaneseq
  %v1565 = vshrl.u32 %v1564, 7
  %v1566 = vsub.s32 0, %v1565
  %v1567 = vrot.slane %v1562, %v1566
  %v1573 = vunpack.c.l.b16 %v1558
  %v1574 = vunpack.c.l.b16 %v1559
  %v1575 = vunpack.c.l.b16 %v1560
  %v1576 = vunpack.c.l.b16 %v1561
  %v1577 = vpack.c.b16 %v1574, %v1573
  %v1578 = vpack.c.b16 %v1576, %v1575
  %v1582 = vsel %vm80, %v1557, 0
  %1584 = vmatprep.subr.bf16.mxu0 0
  %1585 = vmatpush1.bf16.msra.mxu0 %v1577
  %1586 = vmatprep.subr.bf16.mxu0 0
  %1587 = vmatpush1.bf16.msra.mxu0 %v1578
  %1588 = vmatprep.subr.bf16.mxu0 0
  %1589 = vmatpush1.bf16.msra.mxu0 0
  %1590 = vmatprep.subr.bf16.mxu0 0
  %1591 = vmatpush1.bf16.msra.mxu0 0
  %1592 = vmatprep.subr.bf16.mxu0 0
  %1593 = vmatpush1.bf16.msra.mxu0 0
  %1594 = vmatprep.subr.bf16.mxu0 0
  %1595 = vmatpush1.bf16.msra.mxu0 0
  %1596 = vmatprep.subr.bf16.mxu0 0
  %1597 = vmatpush1.bf16.msra.mxu0 0
  %1598 = vmatprep.subr.bf16.mxu0 0
  %1599 = vmatpush1.bf16.msra.mxu0 0
  %1600 = vmatprep.subr.bf16.mxu0 0
  %1601 = vmatpush1.bf16.msra.mxu0 0
  %1602 = vmatprep.subr.bf16.mxu0 0
  %1603 = vmatpush1.bf16.msra.mxu0 0
  %1604 = vmatprep.subr.bf16.mxu0 0
  %1605 = vmatpush1.bf16.msra.mxu0 0
  %1606 = vmatprep.subr.bf16.mxu0 0
  %1607 = vmatpush1.bf16.msra.mxu0 0
  %1608 = vmatprep.subr.bf16.mxu0 0
  %1609 = vmatpush1.bf16.msra.mxu0 0
  %1610 = vmatprep.subr.bf16.mxu0 0
  %1611 = vmatpush1.bf16.msra.mxu0 0
  %1612 = vmatprep.subr.bf16.mxu0 0
  %1613 = vmatpush1.bf16.msra.mxu0 0
  %1614 = vmatprep.subr.bf16.mxu0 0
  %1615 = vmatpush1.bf16.msra.mxu0 0
  %1616 = vmatprep.mubr.bf16.mxu0 0
  %1617 = vmatmul.mubr.bf16.gmra.mrb[0].mxu0 %v1582
  %v1618 = vpop.f32.mrb[0].mxu0
  %v1619 = vadd.f32 %v1567, %v1618
  %v1620 = vpop.f32.mrb[0].mxu0
  %v1621 = vpop.f32.mrb[0].mxu0
  %v1622 = vpop.f32.mrb[0].mxu0
  %1623 = vdwg.mxu0
  %1624 = vmax.xlane.f32.xlu0 %v1619
  %v1625 = vpop.xlane.xlu0 %1624
  %v1626 = vsub.f32 %v1619, %v1625
  %v1627 = vmul.f32 %v1626, 1.442695
  %v1628 = vpow.pop %v1627
  %1629 = vadd.xlane.f32.xlu0 %v1628
  %v1630 = vpop.xlane.xlu0 %1629
  %v1631 = vlog2.pop %v1630
  %v1632 = vmul.f32 %v1631, 0.6931472
  %v1633 = vsub.f32 %v1626, %v1632
  %1634 = vst [vmem:[%s14] sm:$0xff] %v1633
  // Predicated region
  $region58: #{attn_decoder_forward.1} parent=0 // pred_check
    _
  $region59: #{attn_decoder_forward.1} parent=0 // pred_check_branch
    %1636 = sbr.rel (0) target = $region61
  $region60: #{attn_decoder_forward.1} parent=0 // pred_region
    _
  $region61: #{attn_decoder_forward.1} parent=0 // pred_fallthru
    _
  // Predicated region
  $region62: #{attn_decoder_forward.1} parent=0 // pred_check
    _
  $region63: #{attn_decoder_forward.1} parent=0 // pred_check_branch
    %1638 = sbr.rel (0) target = $region65
  $region64: #{attn_decoder_forward.1} parent=0 // pred_region
    _
  $region65: #{attn_decoder_forward.1} parent=0 // pred_fallthru
    _
  // Predicated region
  $region66: #{attn_decoder_forward.1} parent=0 // pred_check
    _
  $region67: #{attn_decoder_forward.1} parent=0 // pred_check_branch
    %1640 = sbr.rel (0) target = $region69
  $region68: #{attn_decoder_forward.1} parent=0 // pred_region
    _
  $region69: #{attn_decoder_forward.1} parent=0 // pred_fallthru
    _
  // Predicated region
  $region70: #{attn_decoder_forward.1} parent=0 // pred_check
    _
  $region71: #{attn_decoder_forward.1} parent=0 // pred_check_branch
    %1642 = sbr.rel (0) target = $region73
  $region72: #{attn_decoder_forward.1} parent=0 // pred_region
    _
  $region73: #{attn_decoder_forward.1} parent=0 // pred_fallthru
    _
  // Predicated region
  $region74: #{attn_decoder_forward.1} parent=0 // pred_check
    _
  $region75: #{attn_decoder_forward.1} parent=0 // pred_check_branch
    %1644 = sbr.rel (0) target = $region77
  $region76: #{attn_decoder_forward.1} parent=0 // pred_region
    _
  $region77: #{attn_decoder_forward.1} parent=0 // pred_fallthru
    _
  // Predicated region
  $region78: #{attn_decoder_forward.1} parent=0 // pred_check
    _
  $region79: #{attn_decoder_forward.1} parent=0 // pred_check_branch
    %1646 = sbr.rel (0) target = $region81
  $region80: #{attn_decoder_forward.1} parent=0 // pred_region
    _
  $region81: #{attn_decoder_forward.1} parent=0 // pred_fallthru
    _

</llo_original>
